<compile_context>
chip_gen: v7x
topology: tpu7x:2x2x1
jax: 0.10.0
libtpu: 0.0.40
codegen_flags: <defaults>
</compile_context>

<pallas_src>
import math
import functools

import jax
import jax.numpy as jnp
from jax.experimental import pallas as pl
from jax.experimental.pallas import tpu as pltpu


def _round_up(a, m):
    return ((a + m - 1) // m) * m


# --------------------------------------------------------------------------
# Fused kernel: conv1(k=3,s=1)+ReLU -> conv2(k=5,s=3)+ReLU -> Linear -> PosEnc
# --------------------------------------------------------------------------
def _fused_subsample_kernel(xt_ref, w1_ref, b1_ref, w2_ref, b2_ref,
                            wl_ref, bl_ref, pe_ref, o_ref, h_scr,
                            *, tt2, xscale):
    # xt_ref : (3, R1, 3*idim_p)   tile-major phase-split im2col:
    #                              xt[p, i, :] = concat_m x[3*(r0+i)+p+m, :]
    # w1_ref : (3*idim_p, odim_p)  conv1 weights, taps stacked on the K axis
    # w2_ref : (5, odim_p, odim_p) conv2 per-tap weights (cin, cout)
    # wl_ref : (odim_p, odim_p)    linear weight (already transposed)
    # pe_ref : (tt2, odim_p)       positional encoding tile (compute dtype)
    # o_ref  : (tt2, odim_p)       output tile
    # h_scr  : (3, R1, odim_p)     conv1 output, phase-split:
    #                              h_scr[p, i] = h1[3*(r0 + i) + p]
    R1 = tt2 + 8

    # ---- stage 1: conv1d(idim -> odim, k=3, s=1) + ReLU, 3 taps folded ----
    # One K = 3*idim_p matmul per phase; loads start at row 0 (fully aligned).
    for p in range(3):
        a = jnp.dot(xt_ref[p, :, :], w1_ref[...],
                    preferred_element_type=jnp.float32)
        h_scr[p] = jnp.maximum(a + b1_ref[...], 0.0).astype(h_scr.dtype)

    # ---- stage 2: conv1d(odim -> odim, k=5, s=3) + ReLU ----
    # output row r uses h1[3*(r0+r)+k] = h_scr[k % 3, r + k // 3]
    acc2 = jnp.dot(h_scr[0, :tt2, :], w2_ref[0],
                   preferred_element_type=jnp.float32)
    for k in (1, 2):
        acc2 = acc2 + jnp.dot(h_scr[k, :tt2, :], w2_ref[k],
                              preferred_element_type=jnp.float32)
    for k in (3, 4):
        # +1-row window inside the 8-row-rounded scratch (inherent to the
        # stride-3 phase decomposition; one sublane shift per tap).
        acc2 = acc2 + jnp.dot(h_scr[k - 3, 1:tt2 + 1, :], w2_ref[k],
                              preferred_element_type=jnp.float32)
    h2 = jnp.maximum(acc2 + b2_ref[...], 0.0)

    # ---- out: Linear(odim, odim) then PositionalEncoding: y*sqrt(odim)+pe ----
    y = jnp.dot(h2.astype(wl_ref.dtype), wl_ref[...],
                preferred_element_type=jnp.float32) + bl_ref[...]
    o_ref[...] = (y * xscale + pe_ref[...].astype(jnp.float32)).astype(o_ref.dtype)
    # TODO(synk): dropout omitted (eval-mode semantics; identity).


# --------------------------------------------------------------------------
# Wrapper: layout prep (128-padding, tile-major phase-split im2col, per-tap
# weight transpose) in plain JAX; whole conv/linear/pos-enc in one pallas_call.
# --------------------------------------------------------------------------
def conv1d_subsampling3_forward(x, x_mask, params, *, time_tile=512,
                                compute_dtype=jnp.bfloat16,
                                out_dtype=jnp.float32):
    W1, b1, W2, b2, Wl, bl, pe = params
    B, T, idim = x.shape
    odim = W1.shape[0]
    assert T >= 7, "need at least 7 frames for k=3 then k=5/s=3"
    T2 = (T - 7) // 3 + 1
    assert pe.shape[0] >= T2, "positional encoding shorter than subsampled length"
    xscale = math.sqrt(odim)

    # lane-aligned feature dims (MXU / vst density)
    idim_p = _round_up(idim, 128)
    odim_p = _round_up(odim, 128)
    Kc = 3 * idim_p                       # folded conv1 contraction depth

    # time tile (in conv2-output rows), multiple of 8 sublanes
    tt2 = min(_round_up(T2, 8), _round_up(time_tile, 8))
    nT = -(-T2 // tt2)                    # number of time tiles
    R1 = tt2 + 8                          # stage-1 rows per phase (8-rounded)

    # ---- input prep: pad -> im2col on features -> tile-major phase split ----
    Fmax = 3 * nT * tt2 + 3 * (R1 - tt2)  # conv1 rows covered (incl. halo)
    Tneed = Fmax + 2
    xc = jnp.pad(x, ((0, 0), (0, Tneed - T), (0, idim_p - idim))
                 ).astype(compute_dtype)
    # xi[b, f, :] = concat(x[f], x[f+1], x[f+2])  (conv1 im2col)
    xi = jnp.concatenate([xc[:, m:m + Fmax] for m in range(3)], axis=-1)
    # tile-major, phase-split, halo-padded: xt[b, t, p, i] = xi[b, 3*(t*tt2+i)+p]
    xt = jnp.stack([xi[:, 3 * t * tt2: 3 * t * tt2 + 3 * R1]
                    for t in range(nT)], axis=1)
    xt = xt.reshape(B, nT, R1, 3, Kc).transpose(0, 1, 3, 2, 4)   # (B,nT,3,R1,Kc)

    # ---- weights: per-tap (cin, cout) layout, zero-padded to 128 multiples ----
    W1t = jnp.transpose(W1, (2, 1, 0))                               # (3,idim,odim)
    W1t = jnp.pad(W1t, ((0, 0), (0, idim_p - idim), (0, odim_p - odim)))
    W1c = W1t.reshape(Kc, odim_p).astype(compute_dtype)              # (3*idim_p,odim_p)
    W2t = jnp.transpose(W2, (2, 1, 0))                               # (5,odim,odim)
    W2t = jnp.pad(W2t, ((0, 0), (0, odim_p - odim), (0, odim_p - odim))
                  ).astype(compute_dtype)
    Wlt = jnp.pad(Wl.T, ((0, odim_p - odim), (0, odim_p - odim))
                  ).astype(compute_dtype)
    b1r = jnp.pad(b1, (0, odim_p - odim)).reshape(1, odim_p).astype(jnp.float32)
    b2r = jnp.pad(b2, (0, odim_p - odim)).reshape(1, odim_p).astype(jnp.float32)
    blr = jnp.pad(bl, (0, odim_p - odim)).reshape(1, odim_p).astype(jnp.float32)
    pe_pad = jnp.pad(pe[:T2], ((0, nT * tt2 - T2), (0, odim_p - odim))
                     ).astype(compute_dtype)

    # ---- cost estimate (advisory, helps XLA schedule around the call) ----
    it = jnp.dtype(compute_dtype).itemsize
    flops = 2 * B * nT * (3 * R1 * Kc * odim_p + 6 * tt2 * odim_p * odim_p)
    bytes_accessed = (xt.size * it + (W1c.size + W2t.size + Wlt.size) * it
                      + B * pe_pad.size * it
                      + B * T2 * odim_p * jnp.dtype(out_dtype).itemsize)

    kernel = functools.partial(_fused_subsample_kernel, tt2=tt2, xscale=xscale)

    y_full = pl.pallas_call(
        kernel,
        out_shape=jax.ShapeDtypeStruct((B, T2, odim_p), out_dtype),
        grid=(B, nT),
        in_specs=[
            # tile-major input: per-step block is (3, R1, Kc) incl. conv halo
            pl.BlockSpec((None, None, 3, R1, Kc), lambda b, t: (b, t, 0, 0, 0)),
            # weights / biases: constant block index -> stay VMEM-resident
            pl.BlockSpec((Kc, odim_p), lambda b, t: (0, 0)),
            pl.BlockSpec((1, odim_p), lambda b, t: (0, 0)),
            pl.BlockSpec((5, odim_p, odim_p), lambda b, t: (0, 0, 0)),
            pl.BlockSpec((1, odim_p), lambda b, t: (0, 0)),
            pl.BlockSpec((odim_p, odim_p), lambda b, t: (0, 0)),
            pl.BlockSpec((1, odim_p), lambda b, t: (0, 0)),
            # positional encoding: tiled along the subsampled time axis
            pl.BlockSpec((tt2, odim_p), lambda b, t: (t, 0)),
        ],
        out_specs=pl.BlockSpec((None, tt2, odim_p), lambda b, t: (b, t, 0)),
        scratch_shapes=[pltpu.VMEM((3, R1, odim_p), compute_dtype)],
        compiler_params=pltpu.CompilerParams(
            dimension_semantics=("parallel", "parallel"),
            vmem_limit_bytes=32 * 1024 * 1024),
        cost_estimate=pl.CostEstimate(flops=int(flops), transcendentals=0,
                                      bytes_accessed=int(bytes_accessed)),
    )(xt, W1c, b1r, W2t, b2r, Wlt, blr, pe_pad)

    y = y_full[:, :, :odim] if odim_p != odim else y_full
    if x_mask is None:
        return y, None
    # mask subsampling: x_mask[:, :, :-2:1][:, :, :-4:3]
    return y, x_mask[:, :, :-2][:, :, :-4:3]


# --------------------------------------------------------------------------
# Pure-JAX reference (direct conv) for correctness check
# --------------------------------------------------------------------------
def _reference(x, params):
    W1, b1, W2, b2, Wl, bl, pe = params
    odim = W1.shape[0]

    def conv1d(xc, W, b, stride):
        O, C, K = W.shape
        T = xc.shape[-1]
        To = (T - K) // stride + 1
        y = jnp.zeros((xc.shape[0], O, To), jnp.float32)
        for k in range(K):
            xk = xc[:, :, k:k + stride * (To - 1) + 1:stride]
            y = y + jnp.einsum('bct,oc->bot', xk, W[:, :, k])
        return y + b[None, :, None]

    xt = jnp.transpose(x, (0, 2, 1))                       # (B, idim, T)
    h = jax.nn.relu(conv1d(xt, W1, b1, 1))
    h = jax.nn.relu(conv1d(h, W2, b2, 3))
    h = jnp.transpose(h, (0, 2, 1))                        # (B, T2, odim)
    y = h @ Wl.T + bl
    return y * math.sqrt(odim) + pe[None, :h.shape[1]]


def make_posenc(max_len, d):
    pos = jnp.arange(max_len, dtype=jnp.float32)[:, None]
    div = jnp.exp(jnp.arange(0, d, 2, dtype=jnp.float32) *
                  -(math.log(10000.0) / d))
    pe = jnp.zeros((max_len, d), jnp.float32)
    pe = pe.at[:, 0::2].set(jnp.sin(pos * div))
    pe = pe.at[:, 1::2].set(jnp.cos(pos * div))
    return pe


if __name__ == "__main__":
    B, T, idim, odim = 2, 16, 8, 16

    key = jax.random.PRNGKey(0)
    ks = jax.random.split(key, 8)
    x = jax.random.normal(ks[0], (B, T, idim), jnp.float32)
    x_mask = jnp.ones((B, 1, T), dtype=jnp.bool_)

    # deterministic synthetic parameters (shapes from the torch module __init__)
    W1 = jax.random.normal(ks[1], (odim, idim, 3), jnp.float32) * 0.1
    b1 = jax.random.normal(ks[2], (odim,), jnp.float32) * 0.1
    W2 = jax.random.normal(ks[3], (odim, odim, 5), jnp.float32) * 0.1
    b2 = jax.random.normal(ks[4], (odim,), jnp.float32) * 0.1
    Wl = jax.random.normal(ks[5], (odim, odim), jnp.float32) * 0.1
    bl = jax.random.normal(ks[6], (odim,), jnp.float32) * 0.1
    pe = make_posenc(T, odim)
    params = (W1, b1, W2, b2, Wl, bl, pe)

    y_ref = _reference(x, params)

    # f32 compute path: tight check against the pure-JAX reference
    y32, mask_out = conv1d_subsampling3_forward(
        x, x_mask, params, compute_dtype=jnp.float32)
    y32 = jax.block_until_ready(y32)
    mask_out = jax.block_until_ready(mask_out)

    # shape checks: T1 = T-2 = 14, T2 = (T1-5)//3 + 1 = 4
    assert y32.shape == (B, 4, odim), y32.shape
    assert mask_out.shape == (B, 1, 4), mask_out.shape
    assert jnp.allclose(y32, y_ref, atol=2e-3, rtol=2e-3), \
        float(jnp.max(jnp.abs(y32 - y_ref)))

    # bf16 MXU path (production default): looser tolerance
    ybf, _ = conv1d_subsampling3_forward(
        x, x_mask, params, compute_dtype=jnp.bfloat16)
    ybf = jax.block_until_ready(ybf)
    assert ybf.shape == (B, 4, odim), ybf.shape
    assert jnp.allclose(ybf, y_ref, atol=1e-1, rtol=1e-1), \
        float(jnp.max(jnp.abs(ybf - y_ref)))

    print("KERNEL_OK")
</pallas_src>

<mosaic_0001>
module attributes {stable_mosaic.version = 11 : i64} {
  func.func @_fused_subsample_kernel(%arg0: i32, %arg1: i32, %arg2: memref<1x1x3x16x384xf32, #tpu.memory_space<vmem>>, %arg3: memref<384x128xf32, #tpu.memory_space<vmem>>, %arg4: memref<1x128xf32, #tpu.memory_space<vmem>>, %arg5: memref<5x128x128xf32, #tpu.memory_space<vmem>>, %arg6: memref<1x128xf32, #tpu.memory_space<vmem>>, %arg7: memref<128x128xf32, #tpu.memory_space<vmem>>, %arg8: memref<1x128xf32, #tpu.memory_space<vmem>>, %arg9: memref<8x128xf32, #tpu.memory_space<vmem>>, %arg10: memref<1x8x128xf32, #tpu.memory_space<vmem>>, %arg11: memref<3x16x128xf32, #tpu.memory_space<vmem>>) attributes {dimension_semantics = [#tpu.dimension_semantics<parallel>, #tpu.dimension_semantics<parallel>], iteration_bounds = array<i64: 2, 1>, scalar_prefetch = 0 : i64, scratch_operands = 1 : i64, tpu.core_type = #tpu.core_type<tc>, window_params = [{transform_indices = @transform_0, window_bounds = array<i64: 1, 1, 3, 16, 384>}, {pipeline_mode = #tpu.pipeline_mode<synchronous>, transform_indices = @transform_1, window_bounds = array<i64: 384, 128>}, {pipeline_mode = #tpu.pipeline_mode<synchronous>, transform_indices = @transform_2, window_bounds = array<i64: 1, 128>}, {pipeline_mode = #tpu.pipeline_mode<synchronous>, transform_indices = @transform_3, window_bounds = array<i64: 5, 128, 128>}, {pipeline_mode = #tpu.pipeline_mode<synchronous>, transform_indices = @transform_4, window_bounds = array<i64: 1, 128>}, {pipeline_mode = #tpu.pipeline_mode<synchronous>, transform_indices = @transform_5, window_bounds = array<i64: 128, 128>}, {pipeline_mode = #tpu.pipeline_mode<synchronous>, transform_indices = @transform_6, window_bounds = array<i64: 1, 128>}, {transform_indices = @transform_7, window_bounds = array<i64: 8, 128>}, {transform_indices = @transform_8, window_bounds = array<i64: 1, 8, 128>}]} {
    %c0 = arith.constant 0 : index
    %c0_0 = arith.constant 0 : index
    %c0_1 = arith.constant 0 : index
    %c0_2 = arith.constant 0 : index
    %c0_3 = arith.constant 0 : index
    %0 = vector.load %arg2[%c0, %c0_0, %c0_1, %c0_2, %c0_3] : memref<1x1x3x16x384xf32, #tpu.memory_space<vmem>>, vector<1x1x1x16x384xf32>
    %1 = vector.shape_cast %0 : vector<1x1x1x16x384xf32> to vector<16x384xf32>
    %c0_4 = arith.constant 0 : index
    %c0_5 = arith.constant 0 : index
    %2 = vector.load %arg3[%c0_4, %c0_5] : memref<384x128xf32, #tpu.memory_space<vmem>>, vector<384x128xf32>
    %cst = arith.constant dense<0.000000e+00> : vector<16x128xf32>
    %3 = tpu.matmul %1, %2, %cst {dimension_numbers = #tpu.dot_dimension_numbers<[1], [0], [0], [1], [0, 0, 1, 1], [], []>} : vector<16x384xf32>, vector<384x128xf32>, vector<16x128xf32> -> vector<16x128xf32>
    %c0_6 = arith.constant 0 : index
    %c0_7 = arith.constant 0 : index
    %4 = vector.load %arg4[%c0_6, %c0_7] : memref<1x128xf32, #tpu.memory_space<vmem>>, vector<1x128xf32>
    %5 = vector.broadcast %4 : vector<1x128xf32> to vector<16x128xf32>
    %6 = arith.addf %3, %5 : vector<16x128xf32>
    %cst_8 = arith.constant 0.000000e+00 : f32
    %7 = vector.broadcast %cst_8 : f32 to vector<16x128xf32>
    %8 = arith.maximumf %6, %7 : vector<16x128xf32>
    %c0_9 = arith.constant 0 : index
    %c0_10 = arith.constant 0 : index
    %c0_11 = arith.constant 0 : index
    %9 = vector.load %arg11[%c0_9, %c0_10, %c0_11] : memref<3x16x128xf32, #tpu.memory_space<vmem>>, vector<1x16x128xf32>
    %10 = vector.shape_cast %9 : vector<1x16x128xf32> to vector<16x128xf32>
    %11 = vector.shape_cast %8 : vector<16x128xf32> to vector<1x16x128xf32>
    tpu.vector_store %arg11[%c0_9, %c0_10, %c0_11], %11 {strides = array<i32>} : memref<3x16x128xf32, #tpu.memory_space<vmem>>, vector<1x16x128xf32>,
    %c0_12 = arith.constant 0 : index
    %c0_13 = arith.constant 0 : index
    %c1 = arith.constant 1 : index
    %c0_14 = arith.constant 0 : index
    %c0_15 = arith.constant 0 : index
    %12 = vector.load %arg2[%c0_12, %c0_13, %c1, %c0_14, %c0_15] : memref<1x1x3x16x384xf32, #tpu.memory_space<vmem>>, vector<1x1x1x16x384xf32>
    %13 = vector.shape_cast %12 : vector<1x1x1x16x384xf32> to vector<16x384xf32>
    %c0_16 = arith.constant 0 : index
    %c0_17 = arith.constant 0 : index
    %14 = vector.load %arg3[%c0_16, %c0_17] : memref<384x128xf32, #tpu.memory_space<vmem>>, vector<384x128xf32>
    %cst_18 = arith.constant dense<0.000000e+00> : vector<16x128xf32>
    %15 = tpu.matmul %13, %14, %cst_18 {dimension_numbers = #tpu.dot_dimension_numbers<[1], [0], [0], [1], [0, 0, 1, 1], [], []>} : vector<16x384xf32>, vector<384x128xf32>, vector<16x128xf32> -> vector<16x128xf32>
    %c0_19 = arith.constant 0 : index
    %c0_20 = arith.constant 0 : index
    %16 = vector.load %arg4[%c0_19, %c0_20] : memref<1x128xf32, #tpu.memory_space<vmem>>, vector<1x128xf32>
    %17 = vector.broadcast %16 : vector<1x128xf32> to vector<16x128xf32>
    %18 = arith.addf %15, %17 : vector<16x128xf32>
    %cst_21 = arith.constant 0.000000e+00 : f32
    %19 = vector.broadcast %cst_21 : f32 to vector<16x128xf32>
    %20 = arith.maximumf %18, %19 : vector<16x128xf32>
    %c1_22 = arith.constant 1 : index
    %c0_23 = arith.constant 0 : index
    %c0_24 = arith.constant 0 : index
    %21 = vector.load %arg11[%c1_22, %c0_23, %c0_24] : memref<3x16x128xf32, #tpu.memory_space<vmem>>, vector<1x16x128xf32>
    %22 = vector.shape_cast %21 : vector<1x16x128xf32> to vector<16x128xf32>
    %23 = vector.shape_cast %20 : vector<16x128xf32> to vector<1x16x128xf32>
    tpu.vector_store %arg11[%c1_22, %c0_23, %c0_24], %23 {strides = array<i32>} : memref<3x16x128xf32, #tpu.memory_space<vmem>>, vector<1x16x128xf32>,
    %c0_25 = arith.constant 0 : index
    %c0_26 = arith.constant 0 : index
    %c2 = arith.constant 2 : index
    %c0_27 = arith.constant 0 : index
    %c0_28 = arith.constant 0 : index
    %24 = vector.load %arg2[%c0_25, %c0_26, %c2, %c0_27, %c0_28] : memref<1x1x3x16x384xf32, #tpu.memory_space<vmem>>, vector<1x1x1x16x384xf32>
    %25 = vector.shape_cast %24 : vector<1x1x1x16x384xf32> to vector<16x384xf32>
    %c0_29 = arith.constant 0 : index
    %c0_30 = arith.constant 0 : index
    %26 = vector.load %arg3[%c0_29, %c0_30] : memref<384x128xf32, #tpu.memory_space<vmem>>, vector<384x128xf32>
    %cst_31 = arith.constant dense<0.000000e+00> : vector<16x128xf32>
    %27 = tpu.matmul %25, %26, %cst_31 {dimension_numbers = #tpu.dot_dimension_numbers<[1], [0], [0], [1], [0, 0, 1, 1], [], []>} : vector<16x384xf32>, vector<384x128xf32>, vector<16x128xf32> -> vector<16x128xf32>
    %c0_32 = arith.constant 0 : index
    %c0_33 = arith.constant 0 : index
    %28 = vector.load %arg4[%c0_32, %c0_33] : memref<1x128xf32, #tpu.memory_space<vmem>>, vector<1x128xf32>
    %29 = vector.broadcast %28 : vector<1x128xf32> to vector<16x128xf32>
    %30 = arith.addf %27, %29 : vector<16x128xf32>
    %cst_34 = arith.constant 0.000000e+00 : f32
    %31 = vector.broadcast %cst_34 : f32 to vector<16x128xf32>
    %32 = arith.maximumf %30, %31 : vector<16x128xf32>
    %c2_35 = arith.constant 2 : index
    %c0_36 = arith.constant 0 : index
    %c0_37 = arith.constant 0 : index
    %33 = vector.load %arg11[%c2_35, %c0_36, %c0_37] : memref<3x16x128xf32, #tpu.memory_space<vmem>>, vector<1x16x128xf32>
    %34 = vector.shape_cast %33 : vector<1x16x128xf32> to vector<16x128xf32>
    %35 = vector.shape_cast %32 : vector<16x128xf32> to vector<1x16x128xf32>
    tpu.vector_store %arg11[%c2_35, %c0_36, %c0_37], %35 {strides = array<i32>} : memref<3x16x128xf32, #tpu.memory_space<vmem>>, vector<1x16x128xf32>,
    %c0_38 = arith.constant 0 : index
    %c0_39 = arith.constant 0 : index
    %c0_40 = arith.constant 0 : index
    %36 = vector.load %arg11[%c0_38, %c0_39, %c0_40] : memref<3x16x128xf32, #tpu.memory_space<vmem>>, vector<1x8x128xf32>
    %37 = vector.shape_cast %36 : vector<1x8x128xf32> to vector<8x128xf32>
    %c0_41 = arith.constant 0 : index
    %c0_42 = arith.constant 0 : index
    %c0_43 = arith.constant 0 : index
    %38 = vector.load %arg5[%c0_41, %c0_42, %c0_43] : memref<5x128x128xf32, #tpu.memory_space<vmem>>, vector<1x128x128xf32>
    %39 = vector.shape_cast %38 : vector<1x128x128xf32> to vector<128x128xf32>
    %cst_44 = arith.constant dense<0.000000e+00> : vector<8x128xf32>
    %40 = tpu.matmul %37, %39, %cst_44 {dimension_numbers = #tpu.dot_dimension_numbers<[1], [0], [0], [1], [0, 0, 1, 1], [], []>} : vector<8x128xf32>, vector<128x128xf32>, vector<8x128xf32> -> vector<8x128xf32>
    %c1_45 = arith.constant 1 : index
    %c0_46 = arith.constant 0 : index
    %c0_47 = arith.constant 0 : index
    %41 = vector.load %arg11[%c1_45, %c0_46, %c0_47] : memref<3x16x128xf32, #tpu.memory_space<vmem>>, vector<1x8x128xf32>
    %42 = vector.shape_cast %41 : vector<1x8x128xf32> to vector<8x128xf32>
    %c1_48 = arith.constant 1 : index
    %c0_49 = arith.constant 0 : index
    %c0_50 = arith.constant 0 : index
    %43 = vector.load %arg5[%c1_48, %c0_49, %c0_50] : memref<5x128x128xf32, #tpu.memory_space<vmem>>, vector<1x128x128xf32>
    %44 = vector.shape_cast %43 : vector<1x128x128xf32> to vector<128x128xf32>
    %cst_51 = arith.constant dense<0.000000e+00> : vector<8x128xf32>
    %45 = tpu.matmul %42, %44, %cst_51 {dimension_numbers = #tpu.dot_dimension_numbers<[1], [0], [0], [1], [0, 0, 1, 1], [], []>} : vector<8x128xf32>, vector<128x128xf32>, vector<8x128xf32> -> vector<8x128xf32>
    %46 = arith.addf %40, %45 : vector<8x128xf32>
    %c2_52 = arith.constant 2 : index
    %c0_53 = arith.constant 0 : index
    %c0_54 = arith.constant 0 : index
    %47 = vector.load %arg11[%c2_52, %c0_53, %c0_54] : memref<3x16x128xf32, #tpu.memory_space<vmem>>, vector<1x8x128xf32>
    %48 = vector.shape_cast %47 : vector<1x8x128xf32> to vector<8x128xf32>
    %c2_55 = arith.constant 2 : index
    %c0_56 = arith.constant 0 : index
    %c0_57 = arith.constant 0 : index
    %49 = vector.load %arg5[%c2_55, %c0_56, %c0_57] : memref<5x128x128xf32, #tpu.memory_space<vmem>>, vector<1x128x128xf32>
    %50 = vector.shape_cast %49 : vector<1x128x128xf32> to vector<128x128xf32>
    %cst_58 = arith.constant dense<0.000000e+00> : vector<8x128xf32>
    %51 = tpu.matmul %48, %50, %cst_58 {dimension_numbers = #tpu.dot_dimension_numbers<[1], [0], [0], [1], [0, 0, 1, 1], [], []>} : vector<8x128xf32>, vector<128x128xf32>, vector<8x128xf32> -> vector<8x128xf32>
    %52 = arith.addf %46, %51 : vector<8x128xf32>
    %c0_59 = arith.constant 0 : index
    %c1_60 = arith.constant 1 : index
    %c0_61 = arith.constant 0 : index
    %53 = vector.load %arg11[%c0_59, %c1_60, %c0_61] : memref<3x16x128xf32, #tpu.memory_space<vmem>>, vector<1x8x128xf32>
    %54 = vector.shape_cast %53 : vector<1x8x128xf32> to vector<8x128xf32>
    %c3 = arith.constant 3 : index
    %c0_62 = arith.constant 0 : index
    %c0_63 = arith.constant 0 : index
    %55 = vector.load %arg5[%c3, %c0_62, %c0_63] : memref<5x128x128xf32, #tpu.memory_space<vmem>>, vector<1x128x128xf32>
    %56 = vector.shape_cast %55 : vector<1x128x128xf32> to vector<128x128xf32>
    %cst_64 = arith.constant dense<0.000000e+00> : vector<8x128xf32>
    %57 = tpu.matmul %54, %56, %cst_64 {dimension_numbers = #tpu.dot_dimension_numbers<[1], [0], [0], [1], [0, 0, 1, 1], [], []>} : vector<8x128xf32>, vector<128x128xf32>, vector<8x128xf32> -> vector<8x128xf32>
    %58 = arith.addf %52, %57 : vector<8x128xf32>
    %c1_65 = arith.constant 1 : index
    %c1_66 = arith.constant 1 : index
    %c0_67 = arith.constant 0 : index
    %59 = vector.load %arg11[%c1_65, %c1_66, %c0_67] : memref<3x16x128xf32, #tpu.memory_space<vmem>>, vector<1x8x128xf32>
    %60 = vector.shape_cast %59 : vector<1x8x128xf32> to vector<8x128xf32>
    %c4 = arith.constant 4 : index
    %c0_68 = arith.constant 0 : index
    %c0_69 = arith.constant 0 : index
    %61 = vector.load %arg5[%c4, %c0_68, %c0_69] : memref<5x128x128xf32, #tpu.memory_space<vmem>>, vector<1x128x128xf32>
    %62 = vector.shape_cast %61 : vector<1x128x128xf32> to vector<128x128xf32>
    %cst_70 = arith.constant dense<0.000000e+00> : vector<8x128xf32>
    %63 = tpu.matmul %60, %62, %cst_70 {dimension_numbers = #tpu.dot_dimension_numbers<[1], [0], [0], [1], [0, 0, 1, 1], [], []>} : vector<8x128xf32>, vector<128x128xf32>, vector<8x128xf32> -> vector<8x128xf32>
    %64 = arith.addf %58, %63 : vector<8x128xf32>
    %c0_71 = arith.constant 0 : index
    %c0_72 = arith.constant 0 : index
    %65 = vector.load %arg6[%c0_71, %c0_72] : memref<1x128xf32, #tpu.memory_space<vmem>>, vector<1x128xf32>
    %66 = vector.broadcast %65 : vector<1x128xf32> to vector<8x128xf32>
    %67 = arith.addf %64, %66 : vector<8x128xf32>
    %cst_73 = arith.constant 0.000000e+00 : f32
    %68 = vector.broadcast %cst_73 : f32 to vector<8x128xf32>
    %69 = arith.maximumf %67, %68 : vector<8x128xf32>
    %c0_74 = arith.constant 0 : index
    %c0_75 = arith.constant 0 : index
    %70 = vector.load %arg7[%c0_74, %c0_75] : memref<128x128xf32, #tpu.memory_space<vmem>>, vector<128x128xf32>
    %cst_76 = arith.constant dense<0.000000e+00> : vector<8x128xf32>
    %71 = tpu.matmul %69, %70, %cst_76 {dimension_numbers = #tpu.dot_dimension_numbers<[1], [0], [0], [1], [0, 0, 1, 1], [], []>} : vector<8x128xf32>, vector<128x128xf32>, vector<8x128xf32> -> vector<8x128xf32>
    %c0_77 = arith.constant 0 : index
    %c0_78 = arith.constant 0 : index
    %72 = vector.load %arg8[%c0_77, %c0_78] : memref<1x128xf32, #tpu.memory_space<vmem>>, vector<1x128xf32>
    %73 = vector.broadcast %72 : vector<1x128xf32> to vector<8x128xf32>
    %74 = arith.addf %71, %73 : vector<8x128xf32>
    %cst_79 = arith.constant 4.000000e+00 : f32
    %75 = vector.broadcast %cst_79 : f32 to vector<8x128xf32>
    %76 = arith.mulf %74, %75 : vector<8x128xf32>
    %c0_80 = arith.constant 0 : index
    %c0_81 = arith.constant 0 : index
    %77 = vector.load %arg9[%c0_80, %c0_81] : memref<8x128xf32, #tpu.memory_space<vmem>>, vector<8x128xf32>
    %78 = arith.addf %76, %77 : vector<8x128xf32>
    %c0_82 = arith.constant 0 : index
    %c0_83 = arith.constant 0 : index
    %c0_84 = arith.constant 0 : index
    %79 = vector.load %arg10[%c0_82, %c0_83, %c0_84] : memref<1x8x128xf32, #tpu.memory_space<vmem>>, vector<1x8x128xf32>
    %80 = vector.shape_cast %79 : vector<1x8x128xf32> to vector<8x128xf32>
    %81 = vector.shape_cast %78 : vector<8x128xf32> to vector<1x8x128xf32>
    tpu.vector_store %arg10[%c0_82, %c0_83, %c0_84], %81 {strides = array<i32>} : memref<1x8x128xf32, #tpu.memory_space<vmem>>, vector<1x8x128xf32>,
    return
  }
  func.func @transform_0(%arg0: i32, %arg1: i32) -> (i32, i32, i32, i32, i32) {
    %c0_i32 = arith.constant 0 : i32
    %c0_i32_0 = arith.constant 0 : i32
    %c0_i32_1 = arith.constant 0 : i32
    %c0_i32_2 = arith.constant 0 : i32
    return %arg0, %arg1, %c0_i32, %c0_i32_0, %c0_i32_1 : i32, i32, i32, i32, i32
  }
  func.func @transform_1(%arg0: i32, %arg1: i32) -> (i32, i32) {
    %c0_i32 = arith.constant 0 : i32
    %c0_i32_0 = arith.constant 0 : i32
    %c0_i32_1 = arith.constant 0 : i32
    return %c0_i32, %c0_i32_0 : i32, i32
  }
  func.func @transform_2(%arg0: i32, %arg1: i32) -> (i32, i32) {
    %c0_i32 = arith.constant 0 : i32
    %c0_i32_0 = arith.constant 0 : i32
    %c0_i32_1 = arith.constant 0 : i32
    return %c0_i32, %c0_i32_0 : i32, i32
  }
  func.func @transform_3(%arg0: i32, %arg1: i32) -> (i32, i32, i32) {
    %c0_i32 = arith.constant 0 : i32
    %c0_i32_0 = arith.constant 0 : i32
    %c0_i32_1 = arith.constant 0 : i32
    %c0_i32_2 = arith.constant 0 : i32
    return %c0_i32, %c0_i32_0, %c0_i32_1 : i32, i32, i32
  }
  func.func @transform_4(%arg0: i32, %arg1: i32) -> (i32, i32) {
    %c0_i32 = arith.constant 0 : i32
    %c0_i32_0 = arith.constant 0 : i32
    %c0_i32_1 = arith.constant 0 : i32
    return %c0_i32, %c0_i32_0 : i32, i32
  }
  func.func @transform_5(%arg0: i32, %arg1: i32) -> (i32, i32) {
    %c0_i32 = arith.constant 0 : i32
    %c0_i32_0 = arith.constant 0 : i32
    %c0_i32_1 = arith.constant 0 : i32
    return %c0_i32, %c0_i32_0 : i32, i32
  }
  func.func @transform_6(%arg0: i32, %arg1: i32) -> (i32, i32) {
    %c0_i32 = arith.constant 0 : i32
    %c0_i32_0 = arith.constant 0 : i32
    %c0_i32_1 = arith.constant 0 : i32
    return %c0_i32, %c0_i32_0 : i32, i32
  }
  func.func @transform_7(%arg0: i32, %arg1: i32) -> (i32, i32) {
    %c0_i32 = arith.constant 0 : i32
    %c0_i32_0 = arith.constant 0 : i32
    return %arg1, %c0_i32 : i32, i32
  }
  func.func @transform_8(%arg0: i32, %arg1: i32) -> (i32, i32, i32) {
    %c0_i32 = arith.constant 0 : i32
    %c0_i32_0 = arith.constant 0 : i32
    return %arg0, %arg1, %c0_i32 : i32, i32, i32
  }
}

</mosaic_0001>

<llo_original>
// kernel: tpu_custom_call.1
$region0: #{tpu_custom_call.1}
  #allocation0 [shape = 'u32[]', space=smem, size = 0x4, offset = 0x4, fixed_abs, tag = 'smem constant byte address 0x4 - core index']
  #allocation1 [shape = 'u32[144,128]{1,0:T(1,128)}', space=vmem, size = 0x12000, scoped, tag = 'internal scratch']
  #allocation2 [shape = 'f32[3,16,128]{2,1,0:T(8,128)}', space=vmem, size = 0x6000, scoped, tag = 'scratch operand']
  %s0 = inlined_call_operand.hbm [shape: f32[2,1,3,16,384], index: 0, kind: input, shape index: {}]
  %s1 = inlined_call_operand.hbm [shape: f32[384,128], index: 1, kind: input, shape index: {}]
  %s2 = inlined_call_operand.vmem [shape: f32[1,128], index: 2, kind: input, shape index: {}]
  %s3 = inlined_call_operand.hbm [shape: f32[5,128,128], index: 3, kind: input, shape index: {}]
  %s4 = inlined_call_operand.vmem [shape: f32[1,128], index: 4, kind: input, shape index: {}]
  %s5 = inlined_call_operand.hbm [shape: f32[128,128], index: 5, kind: input, shape index: {}]
  %s6 = inlined_call_operand.vmem [shape: f32[1,128], index: 6, kind: input, shape index: {}]
  %s7 = inlined_call_operand.vmem [shape: f32[8,128], index: 7, kind: input, shape index: {}]
  %s8 = inlined_call_operand.hbm [shape: f32[2,4,128], index: 8, kind: output, shape index: {}]
  %s9 = sld [smem:[#allocation0]]
  $region81: #{tpu_custom_call.1} parent=0
    _
  %s11 = ssub.s32 1, %s9
  %s12 = scalar_select 0, %s11, %s9
  $region1: #{tpu_custom_call.1} parent=0
    #allocation3 [shape = 'u8[147456]{0}', space=vmem, size = 0x24000, scoped, tag = 'input window, operand 0']
    #allocation4 [shape = 's32[2]{0}', space=sflag, size = 0x8, scoped, tag = 'scoped memory for tpu_custom_call.1']
    #allocation5 [shape = 's32[2]{0}', space=sflag, size = 0x8, scoped, tag = 'scoped memory for tpu_custom_call.1']
    #allocation6 [shape = 'u8[196608]{0}', space=vmem, size = 0x30000, scoped, tag = 'input window, operand 1, single buffered']
    #allocation7 [shape = 's32[1]{0}', space=sflag, size = 0x4, scoped, tag = 'scoped memory for tpu_custom_call.1']
    #allocation8 [shape = 'u8[327680]{0}', space=vmem, size = 0x50000, scoped, tag = 'input window, operand 3, single buffered']
    #allocation9 [shape = 'u8[65536]{0}', space=vmem, size = 0x10000, scoped, tag = 'input window, operand 5, single buffered']
    #allocation10 [shape = 's32[1]{0}', space=sflag, size = 0x4, scoped, tag = 'scoped memory for tpu_custom_call.1']
    #allocation11 [shape = 'u8[8192]{0}', space=vmem, size = 0x2000, scoped, tag = 'output window, operand 0']
    %13 = vsyncpa [#allocation4], 0
    %s14 = scalar_lea.sflag [#allocation4], 1
    %15 = vsyncpa %s14, 0
    %16 = vsyncpa [#allocation7], 0
    %17 = vsyncpa [#allocation10], 0
    %18 = vsyncpa [#allocation5], 0
    %s19 = scalar_lea.sflag [#allocation5], 1
    %20 = vsyncpa %s19, 0
    loop: start=0, step=1, limit=4
    $region2: #{tpu_custom_call.1} parent=1 // loop_pre_header
      _
    $region3: #{tpu_custom_call.1} parent=1 // loop_header
      %s22 = sphi 0, %s26
      %p23 = scmp.ge.s32.totalorder %s22, 4
      %s29 = sphi 0, %s41
      %s30 = sphi 0, %s37
      %s31 = sphi 0, %s29
      %s32 = sphi 0, %s30
      %s33 = sphi 0, %s31
      %s34 = sphi 0, %s32
      %s46 = sphi 0, %s48
      %s49 = sphi 0, %s46
      %s50 = sphi 0, %s49
      %s66 = sphi 0, %s50
      %s70 = sphi 0, %s70
      %s72 = sphi 0, %s70
      %s73 = sphi 0, %s72
      %s87 = sphi 0, %s73
      %s91 = sphi 0, %s91
      %s93 = sphi 0, %s91
      %s94 = sphi 0, %s93
      %s108 = sphi 0, %s94
      %s112 = sphi 0, %s112
      %s114 = sphi 0, %s112
      %s115 = sphi 0, %s114
      %s129 = sphi 0, %s115
      %s133 = sphi 0, %s133
      %s135 = sphi 0, %s133
      %s136 = sphi 0, %s135
      %s150 = sphi 0, %s136
      %s154 = sphi 0, %s154
      %s156 = sphi 0, %s154
      %s157 = sphi 0, %s156
      %s171 = sphi 0, %s157
      %s175 = sphi 0, %s175
      %s177 = sphi 0, %s175
      %s178 = sphi 0, %s177
      %s192 = sphi 0, %s178
      %s198 = sphi 0, %s200
      %s201 = sphi 0, %s198
      %s202 = sphi 0, %s201
      %s218 = sphi 0, %s202
      %s226 = sphi 0, %s228
      %s229 = sphi 0, %s226
      %s230 = sphi 0, %s229
      %s246 = sphi 0, %s230
    $region4: #{tpu_custom_call.1} parent=1 // loop_header_branch
      %25 = sbr.rel (%p23) target = $region8
    $region5: #{tpu_custom_call.1} parent=1 // loop_body
      %s27 = ssub.s32 %s22, 1
      %s28 = ssub.s32 %s22, 2
      %s35 = sadd.s32 1, %s30
      %p36 = scmp.ge.s32.totalorder %s35, 1
      %s37 = scalar_select %p36, 0, %s35
      %s38 = sadd.s32 1, %s29
      %s39 = scalar_select %p36, %s38, %s29
      %p40 = scmp.ge.s32.totalorder %s39, 2
      %s41 = scalar_select %p40, 0, %s39
      %s42 = ssub.s32 %s29, %s41
      %s43 = ssub.s32 %s30, %s37
      %s44 = sor.u32 %s42, %s43
      %p45 = scmp.eq.s32.totalorder %s44, 0
      %s47 = sadd.s32 %s46, 1
      %s48 = scalar_select %p45, %s46, %s47
      %p51 = pneg %p45
      %p52 = scmp.eq.s32.totalorder %s22, 1
      %p53 = por %p51, %p52
      %p54 = scmp.ne.s32.totalorder %s46, %s49
      %p55 = scmp.eq.s32.totalorder %s22, 0
      %p56 = por %p54, %p55
      %p57 = scmp.ne.s32.totalorder %s46, %s49
      %p58 = scmp.eq.s32.totalorder %s27, 1
      %p59 = por %p57, %p58
      %p60 = scmp.ne.s32.totalorder %s49, %s50
      %p61 = scmp.eq.s32.totalorder %s27, 0
      %p62 = por %p60, %p61
      %p63 = scmp.ne.s32.totalorder %s49, %s50
      %p64 = scmp.eq.s32.totalorder %s28, 1
      %p65 = por %p63, %p64
      %p67 = scmp.ne.s32.totalorder %s50, %s66
      %p68 = scmp.eq.s32.totalorder %s28, 0
      %p69 = por %p67, %p68
      %s71 = sadd.s32 %s70, 1
      %p74 = scmp.eq.s32.totalorder %s22, 1
      %p75 = scmp.ne.s32.totalorder %s70, %s72
      %p76 = scmp.eq.s32.totalorder %s22, 0
      %p77 = por %p75, %p76
      %p78 = scmp.ne.s32.totalorder %s70, %s72
      %p79 = scmp.eq.s32.totalorder %s27, 1
      %p80 = por %p78, %p79
      %p81 = scmp.ne.s32.totalorder %s72, %s73
      %p82 = scmp.eq.s32.totalorder %s27, 0
      %p83 = por %p81, %p82
      %p84 = scmp.ne.s32.totalorder %s72, %s73
      %p85 = scmp.eq.s32.totalorder %s28, 1
      %p86 = por %p84, %p85
      %p88 = scmp.ne.s32.totalorder %s73, %s87
      %p89 = scmp.eq.s32.totalorder %s28, 0
      %p90 = por %p88, %p89
      %s92 = sadd.s32 %s91, 1
      %p95 = scmp.eq.s32.totalorder %s22, 1
      %p96 = scmp.ne.s32.totalorder %s91, %s93
      %p97 = scmp.eq.s32.totalorder %s22, 0
      %p98 = por %p96, %p97
      %p99 = scmp.ne.s32.totalorder %s91, %s93
      %p100 = scmp.eq.s32.totalorder %s27, 1
      %p101 = por %p99, %p100
      %p102 = scmp.ne.s32.totalorder %s93, %s94
      %p103 = scmp.eq.s32.totalorder %s27, 0
      %p104 = por %p102, %p103
      %p105 = scmp.ne.s32.totalorder %s93, %s94
      %p106 = scmp.eq.s32.totalorder %s28, 1
      %p107 = por %p105, %p106
      %p109 = scmp.ne.s32.totalorder %s94, %s108
      %p110 = scmp.eq.s32.totalorder %s28, 0
      %p111 = por %p109, %p110
      %s113 = sadd.s32 %s112, 1
      %p116 = scmp.eq.s32.totalorder %s22, 1
      %p117 = scmp.ne.s32.totalorder %s112, %s114
      %p118 = scmp.eq.s32.totalorder %s22, 0
      %p119 = por %p117, %p118
      %p120 = scmp.ne.s32.totalorder %s112, %s114
      %p121 = scmp.eq.s32.totalorder %s27, 1
      %p122 = por %p120, %p121
      %p123 = scmp.ne.s32.totalorder %s114, %s115
      %p124 = scmp.eq.s32.totalorder %s27, 0
      %p125 = por %p123, %p124
      %p126 = scmp.ne.s32.totalorder %s114, %s115
      %p127 = scmp.eq.s32.totalorder %s28, 1
      %p128 = por %p126, %p127
      %p130 = scmp.ne.s32.totalorder %s115, %s129
      %p131 = scmp.eq.s32.totalorder %s28, 0
      %p132 = por %p130, %p131
      %s134 = sadd.s32 %s133, 1
      %p137 = scmp.eq.s32.totalorder %s22, 1
      %p138 = scmp.ne.s32.totalorder %s133, %s135
      %p139 = scmp.eq.s32.totalorder %s22, 0
      %p140 = por %p138, %p139
      %p141 = scmp.ne.s32.totalorder %s133, %s135
      %p142 = scmp.eq.s32.totalorder %s27, 1
      %p143 = por %p141, %p142
      %p144 = scmp.ne.s32.totalorder %s135, %s136
      %p145 = scmp.eq.s32.totalorder %s27, 0
      %p146 = por %p144, %p145
      %p147 = scmp.ne.s32.totalorder %s135, %s136
      %p148 = scmp.eq.s32.totalorder %s28, 1
      %p149 = por %p147, %p148
      %p151 = scmp.ne.s32.totalorder %s136, %s150
      %p152 = scmp.eq.s32.totalorder %s28, 0
      %p153 = por %p151, %p152
      %s155 = sadd.s32 %s154, 1
      %p158 = scmp.eq.s32.totalorder %s22, 1
      %p159 = scmp.ne.s32.totalorder %s154, %s156
      %p160 = scmp.eq.s32.totalorder %s22, 0
      %p161 = por %p159, %p160
      %p162 = scmp.ne.s32.totalorder %s154, %s156
      %p163 = scmp.eq.s32.totalorder %s27, 1
      %p164 = por %p162, %p163
      %p165 = scmp.ne.s32.totalorder %s156, %s157
      %p166 = scmp.eq.s32.totalorder %s27, 0
      %p167 = por %p165, %p166
      %p168 = scmp.ne.s32.totalorder %s156, %s157
      %p169 = scmp.eq.s32.totalorder %s28, 1
      %p170 = por %p168, %p169
      %p172 = scmp.ne.s32.totalorder %s157, %s171
      %p173 = scmp.eq.s32.totalorder %s28, 0
      %p174 = por %p172, %p173
      %s176 = sadd.s32 %s175, 1
      %p179 = scmp.eq.s32.totalorder %s22, 1
      %p180 = scmp.ne.s32.totalorder %s175, %s177
      %p181 = scmp.eq.s32.totalorder %s22, 0
      %p182 = por %p180, %p181
      %p183 = scmp.ne.s32.totalorder %s175, %s177
      %p184 = scmp.eq.s32.totalorder %s27, 1
      %p185 = por %p183, %p184
      %p186 = scmp.ne.s32.totalorder %s177, %s178
      %p187 = scmp.eq.s32.totalorder %s27, 0
      %p188 = por %p186, %p187
      %p189 = scmp.ne.s32.totalorder %s177, %s178
      %p190 = scmp.eq.s32.totalorder %s28, 1
      %p191 = por %p189, %p190
      %p193 = scmp.ne.s32.totalorder %s178, %s192
      %p194 = scmp.eq.s32.totalorder %s28, 0
      %p195 = por %p193, %p194
      %s196 = ssub.s32 %s30, %s37
      %p197 = scmp.eq.s32.totalorder %s196, 0
      %s199 = sadd.s32 %s198, 1
      %s200 = scalar_select %p197, %s198, %s199
      %p203 = pneg %p197
      %p204 = scmp.eq.s32.totalorder %s22, 1
      %p205 = por %p203, %p204
      %p206 = scmp.ne.s32.totalorder %s198, %s201
      %p207 = scmp.eq.s32.totalorder %s22, 0
      %p208 = por %p206, %p207
      %p209 = scmp.ne.s32.totalorder %s198, %s201
      %p210 = scmp.eq.s32.totalorder %s27, 1
      %p211 = por %p209, %p210
      %p212 = scmp.ne.s32.totalorder %s201, %s202
      %p213 = scmp.eq.s32.totalorder %s27, 0
      %p214 = por %p212, %p213
      %p215 = scmp.ne.s32.totalorder %s201, %s202
      %p216 = scmp.eq.s32.totalorder %s28, 1
      %p217 = por %p215, %p216
      %p219 = scmp.ne.s32.totalorder %s202, %s218
      %p220 = scmp.eq.s32.totalorder %s28, 0
      %p221 = por %p219, %p220
      %s222 = ssub.s32 %s29, %s41
      %s223 = ssub.s32 %s30, %s37
      %s224 = sor.u32 %s222, %s223
      %p225 = scmp.eq.s32.totalorder %s224, 0
      %s227 = sadd.s32 %s226, 1
      %s228 = scalar_select %p225, %s226, %s227
      %p231 = pneg %p225
      %p232 = scmp.eq.s32.totalorder %s22, 1
      %p233 = por %p231, %p232
      %p234 = scmp.ne.s32.totalorder %s226, %s229
      %p235 = scmp.eq.s32.totalorder %s22, 0
      %p236 = por %p234, %p235
      %p237 = scmp.ne.s32.totalorder %s226, %s229
      %p238 = scmp.eq.s32.totalorder %s27, 1
      %p239 = por %p237, %p238
      %p240 = scmp.ne.s32.totalorder %s229, %s230
      %p241 = scmp.eq.s32.totalorder %s27, 0
      %p242 = por %p240, %p241
      %p243 = scmp.ne.s32.totalorder %s229, %s230
      %p244 = scmp.eq.s32.totalorder %s28, 1
      %p245 = por %p243, %p244
      %p247 = scmp.ne.s32.totalorder %s230, %s246
      %p248 = scmp.eq.s32.totalorder %s28, 0
      %p249 = por %p247, %p248
      %p250 = scmp.le.s32.totalorder 1, %s22
      %p251 = scmp.lt.s32.totalorder %s22, 3
      %p252 = pnand %p250, %p251
      %p253 = pneg %p252
      // Predicated region
      $region9: #{tpu_custom_call.1} parent=5 // pred_check
        _
      $region10: #{tpu_custom_call.1} parent=5 // pred_check_branch
        %255 = sbr.rel (%p252) target = $region12
      $region11: #{tpu_custom_call.1} parent=5 // pred_region
        %s256 = ssub.s32 %s22, 1
        // Predicated region
        $region13: #{tpu_custom_call.1} parent=11 // pred_check
          %p257 = pneg %p83
        $region14: #{tpu_custom_call.1} parent=11 // pred_check_branch
          %259 = sbr.rel (%p257) target = $region16
        $region15: #{tpu_custom_call.1} parent=11 // pred_region
          %s261 = ssub.s32 6144, 6144
          %262 = vsyncadd [#allocation7], %s261
          %s263 = sshll.u32 [#allocation6], 4
          %s264 = int_to_ptr.vmem [resolvable:$true] %s263
          %269 = dma.hbm_to_vmem [thread:$0]  %s1, 6144, %s264, [#allocation7], 128, 128, 8
        $region16: #{tpu_custom_call.1} parent=11 // pred_fallthru
          _
        // Predicated region
        $region17: #{tpu_custom_call.1} parent=11 // pred_check
          %p270 = pneg %p104
        $region18: #{tpu_custom_call.1} parent=11 // pred_check_branch
          %272 = sbr.rel (%p270) target = $region20
        $region19: #{tpu_custom_call.1} parent=11 // pred_region
          _
        $region20: #{tpu_custom_call.1} parent=11 // pred_fallthru
          _
        // Predicated region
        $region21: #{tpu_custom_call.1} parent=11 // pred_check
          %p273 = pneg %p125
        $region22: #{tpu_custom_call.1} parent=11 // pred_check_branch
          %275 = sbr.rel (%p273) target = $region24
        $region23: #{tpu_custom_call.1} parent=11 // pred_region
          %s277 = ssub.s32 10240, 10240
          %278 = vsyncadd [#allocation7], %s277
          %s279 = sshll.u32 [#allocation8], 4
          %s280 = int_to_ptr.vmem [resolvable:$true] %s279
          %285 = dma.hbm_to_vmem [thread:$0]  %s3, 10240, %s280, [#allocation7], 128, 128, 8
        $region24: #{tpu_custom_call.1} parent=11 // pred_fallthru
          _
        // Predicated region
        $region25: #{tpu_custom_call.1} parent=11 // pred_check
          %p286 = pneg %p146
        $region26: #{tpu_custom_call.1} parent=11 // pred_check_branch
          %288 = sbr.rel (%p286) target = $region28
        $region27: #{tpu_custom_call.1} parent=11 // pred_region
          _
        $region28: #{tpu_custom_call.1} parent=11 // pred_fallthru
          _
        // Predicated region
        $region29: #{tpu_custom_call.1} parent=11 // pred_check
          %p289 = pneg %p167
        $region30: #{tpu_custom_call.1} parent=11 // pred_check_branch
          %291 = sbr.rel (%p289) target = $region32
        $region31: #{tpu_custom_call.1} parent=11 // pred_region
          %s293 = ssub.s32 2048, 2048
          %294 = vsyncadd [#allocation10], %s293
          %s295 = sshll.u32 [#allocation9], 4
          %s296 = int_to_ptr.vmem [resolvable:$true] %s295
          %301 = dma.hbm_to_vmem [thread:$0]  %s5, 2048, %s296, [#allocation10], 128, 128, 8
        $region32: #{tpu_custom_call.1} parent=11 // pred_fallthru
          _
        // Predicated region
        $region33: #{tpu_custom_call.1} parent=11 // pred_check
          %p302 = pneg %p188
        $region34: #{tpu_custom_call.1} parent=11 // pred_check_branch
          %304 = sbr.rel (%p302) target = $region36
        $region35: #{tpu_custom_call.1} parent=11 // pred_region
          _
        $region36: #{tpu_custom_call.1} parent=11 // pred_fallthru
          _
        // Predicated region
        $region37: #{tpu_custom_call.1} parent=11 // pred_check
          %p305 = pneg %p214
        $region38: #{tpu_custom_call.1} parent=11 // pred_check_branch
          %307 = sbr.rel (%p305) target = $region40
        $region39: #{tpu_custom_call.1} parent=11 // pred_region
          %p308 = scmp.lt.s32.totalorder %s32, 0
          %s309 = scalar_select %p308, %s32, 0
          %s310 = smul.addr %s309, 8
          %s311 = scalar_lea.vmem %s7, %s310
        $region40: #{tpu_custom_call.1} parent=11 // pred_fallthru
          _
      $region12: #{tpu_custom_call.1} parent=5 // pred_fallthru
        _
      %p312 = scmp.lt.s32.totalorder %s22, 2
      // Predicated region
      $region41: #{tpu_custom_call.1} parent=5 // pred_check
        %p313 = pneg %p312
      $region42: #{tpu_custom_call.1} parent=5 // pred_check_branch
        %315 = sbr.rel (%p313) target = $region44
      $region43: #{tpu_custom_call.1} parent=5 // pred_region
        // Predicated region
        $region45: #{tpu_custom_call.1} parent=43 // pred_check
          %p316 = pneg %p56
        $region46: #{tpu_custom_call.1} parent=43 // pred_check_branch
          %318 = sbr.rel (%p316) target = $region48
        $region47: #{tpu_custom_call.1} parent=43 // pred_region
          %s319 = sand.u32 %s46, 1
          %s320 = scalar_lea.sflag [#allocation4], %s319
          %s321 = sand.u32 %s46, 1
          %s322 = smul.addr %s321, 144
          %s323 = scalar_lea.vmem [#allocation3], %s322
          %s325 = ssub.s32 2304, 2304
          %326 = vsyncadd %s320, %s325
          %s327 = smul.addr %s30, 18
          %s328 = smul.addr %s29, 18
          %s329 = sadd.s32 %s327, %s328
          %s330 = smul.addr %s329, 128
          %s331 = scalar_lea.hbm %s0, %s330
          %s332 = sshll.u32 %s323, 4
          %s333 = int_to_ptr.vmem [resolvable:$true] %s332
          %338 = dma.hbm_to_vmem [thread:$0]  %s331, 2304, %s333, %s320, 384, 384, 24
        $region48: #{tpu_custom_call.1} parent=43 // pred_fallthru
          _
      $region44: #{tpu_custom_call.1} parent=5 // pred_fallthru
        _
      %p339 = scmp.le.s32.totalorder 1, %s22
      %p340 = scmp.lt.s32.totalorder %s22, 3
      %p341 = pnand %p339, %p340
      %p342 = pneg %p341
      // Predicated region
      $region49: #{tpu_custom_call.1} parent=5 // pred_check
        _
      $region50: #{tpu_custom_call.1} parent=5 // pred_check_branch
        %344 = sbr.rel (%p341) target = $region52
      $region51: #{tpu_custom_call.1} parent=5 // pred_region
        %s345 = ssub.s32 %s22, 1
        %s346 = sand.u32 %s49, 1
        %s347 = scalar_lea.sflag [#allocation4], %s346
        %s348 = sand.u32 %s49, 1
        %s349 = smul.addr %s348, 144
        %s350 = scalar_lea.vmem [#allocation3], %s349
        // Predicated region
        $region53: #{tpu_custom_call.1} parent=51 // pred_check
          %p351 = pneg %p62
        $region54: #{tpu_custom_call.1} parent=51 // pred_check_branch
          %353 = sbr.rel (%p351) target = $region56
        $region55: #{tpu_custom_call.1} parent=51 // pred_region
          %354 = dma.done %s347, 2304
        $region56: #{tpu_custom_call.1} parent=51 // pred_fallthru
          _
        // Predicated region
        $region57: #{tpu_custom_call.1} parent=51 // pred_check
          %p355 = pneg %p83
        $region58: #{tpu_custom_call.1} parent=51 // pred_check_branch
          %357 = sbr.rel (%p355) target = $region60
        $region59: #{tpu_custom_call.1} parent=51 // pred_region
          %358 = dma.done [#allocation7], 6144
        $region60: #{tpu_custom_call.1} parent=51 // pred_fallthru
          _
        // Predicated region
        $region61: #{tpu_custom_call.1} parent=51 // pred_check
          %p359 = pneg %p125
        $region62: #{tpu_custom_call.1} parent=51 // pred_check_branch
          %361 = sbr.rel (%p359) target = $region64
        $region63: #{tpu_custom_call.1} parent=51 // pred_region
          %362 = dma.done [#allocation7], 10240
        $region64: #{tpu_custom_call.1} parent=51 // pred_fallthru
          _
        // Predicated region
        $region65: #{tpu_custom_call.1} parent=51 // pred_check
          %p363 = pneg %p167
        $region66: #{tpu_custom_call.1} parent=51 // pred_check_branch
          %365 = sbr.rel (%p363) target = $region68
        $region67: #{tpu_custom_call.1} parent=51 // pred_region
          %366 = dma.done [#allocation10], 2048
        $region68: #{tpu_custom_call.1} parent=51 // pred_fallthru
          _
        %s367 = sand.u32 %s49, 1
        %s368 = scalar_lea.sflag [#allocation4], %s367
        %s369 = sand.u32 %s49, 1
        %s370 = smul.addr %s369, 144
        %s371 = scalar_lea.vmem [#allocation3], %s370
        %p372 = pneg %p62
        %p373 = pneg %p59
        %p374 = pneg %p83
        %p375 = pneg %p80
        %p376 = pneg %p104
        %p377 = pneg %p101
        %p378 = pneg %p125
        %p379 = pneg %p122
        %p380 = pneg %p146
        %p381 = pneg %p143
        %p382 = pneg %p167
        %p383 = pneg %p164
        %p384 = pneg %p188
        %p385 = pneg %p185
        %p386 = scmp.lt.s32.totalorder %s32, 0
        %s387 = scalar_select %p386, %s32, 0
        %s388 = smul.addr %s387, 8
        %s389 = scalar_lea.vmem %s7, %s388
        %p390 = pneg %p214
        %p391 = pneg %p211
        %p392 = pneg %p242
        %p393 = pneg %p239
        %s394 = sand.u32 %s229, 1
        %s395 = scalar_lea.sflag [#allocation5], %s394
        %s396 = sand.u32 %s229, 1
        %s397 = smul.addr %s396, 8
        %s398 = scalar_lea.vmem [#allocation11], %s397
        %p399 = scmp.lt.s32.totalorder %s32, 0
        %s400 = scalar_select %p399, %s32, 0
        %s401 = smul.addr %s400, 8
        %s402 = scalar_lea.vmem %s7, %s401
        %s403 = smul.u32 2, %s32
        %s404 = ssub.s32 1, %s403
        %s405 = smul.u32 64, %s404
        %v406 = vld [vmem:[%s350] sm:$0xff]
        %v407 = vld [vmem:[%s350 + $0x8] sm:$0xff]
        %v408 = vld [vmem:[%s350 + $0x10] sm:$0xff]
        %v409 = vld [vmem:[%s350 + $0x18] sm:$0xff]
        %v410 = vld [vmem:[%s350 + $0x20] sm:$0xff]
        %v411 = vld [vmem:[%s350 + $0x28] sm:$0xff]
        %v412 = vld [vmem:[#allocation6] sm:$0xff]
        %v413 = vld [vmem:[#allocation6 + $0x8] sm:$0xff]
        %v414 = vld [vmem:[#allocation6 + $0x10] sm:$0xff]
        %v415 = vld [vmem:[#allocation6 + $0x18] sm:$0xff]
        %v416 = vld [vmem:[#allocation6 + $0x20] sm:$0xff]
        %v417 = vld [vmem:[#allocation6 + $0x28] sm:$0xff]
        %v418 = vld [vmem:[#allocation6 + $0x30] sm:$0xff]
        %v419 = vld [vmem:[#allocation6 + $0x38] sm:$0xff]
        %v420 = vld [vmem:[#allocation6 + $0x40] sm:$0xff]
        %v421 = vld [vmem:[#allocation6 + $0x48] sm:$0xff]
        %v422 = vld [vmem:[#allocation6 + $0x50] sm:$0xff]
        %v423 = vld [vmem:[#allocation6 + $0x58] sm:$0xff]
        %v424 = vld [vmem:[#allocation6 + $0x60] sm:$0xff]
        %v425 = vld [vmem:[#allocation6 + $0x68] sm:$0xff]
        %v426 = vld [vmem:[#allocation6 + $0x70] sm:$0xff]
        %v427 = vld [vmem:[#allocation6 + $0x78] sm:$0xff]
        %v428 = vld [vmem:[#allocation6 + $0x80] sm:$0xff]
        %v429 = vld [vmem:[#allocation6 + $0x88] sm:$0xff]
        %v430 = vld [vmem:[#allocation6 + $0x90] sm:$0xff]
        %v431 = vld [vmem:[#allocation6 + $0x98] sm:$0xff]
        %v432 = vld [vmem:[#allocation6 + $0xa0] sm:$0xff]
        %v433 = vld [vmem:[#allocation6 + $0xa8] sm:$0xff]
        %v434 = vld [vmem:[#allocation6 + $0xb0] sm:$0xff]
        %v435 = vld [vmem:[#allocation6 + $0xb8] sm:$0xff]
        %v436 = vld [vmem:[#allocation6 + $0xc0] sm:$0xff]
        %v437 = vld [vmem:[#allocation6 + $0xc8] sm:$0xff]
        %v438 = vld [vmem:[#allocation6 + $0xd0] sm:$0xff]
        %v439 = vld [vmem:[#allocation6 + $0xd8] sm:$0xff]
        %v440 = vld [vmem:[#allocation6 + $0xe0] sm:$0xff]
        %v441 = vld [vmem:[#allocation6 + $0xe8] sm:$0xff]
        %v442 = vld [vmem:[#allocation6 + $0xf0] sm:$0xff]
        %v443 = vld [vmem:[#allocation6 + $0xf8] sm:$0xff]
        %v444 = vld [vmem:[#allocation6 + $0x100] sm:$0xff]
        %v445 = vld [vmem:[#allocation6 + $0x108] sm:$0xff]
        %v446 = vld [vmem:[#allocation6 + $0x110] sm:$0xff]
        %v447 = vld [vmem:[#allocation6 + $0x118] sm:$0xff]
        %v448 = vld [vmem:[#allocation6 + $0x120] sm:$0xff]
        %v449 = vld [vmem:[#allocation6 + $0x128] sm:$0xff]
        %v450 = vld [vmem:[#allocation6 + $0x130] sm:$0xff]
        %v451 = vld [vmem:[#allocation6 + $0x138] sm:$0xff]
        %v452 = vld [vmem:[#allocation6 + $0x140] sm:$0xff]
        %v453 = vld [vmem:[#allocation6 + $0x148] sm:$0xff]
        %v454 = vld [vmem:[#allocation6 + $0x150] sm:$0xff]
        %v455 = vld [vmem:[#allocation6 + $0x158] sm:$0xff]
        %v456 = vld [vmem:[#allocation6 + $0x160] sm:$0xff]
        %v457 = vld [vmem:[#allocation6 + $0x168] sm:$0xff]
        %v458 = vld [vmem:[#allocation6 + $0x170] sm:$0xff]
        %v459 = vld [vmem:[#allocation6 + $0x178] sm:$0xff]
        %v460 = vld [vmem:[%s2] sm:$0x1]
        %v462 = vlaneseq
        %v463 = vshrl.u32 %v462, 7
        %v464 = vsub.s32 0, %v463
        %v465 = vrot.slane %v460, %v464
        %467 = vmatprep.subr.mxu0 0.0
        %468 = vmatpush1.msra.mxu0 %v412
        %469 = vmatprep.subr.mxu0 0.0
        %470 = vmatpush1.msra.mxu0 %v413
        %471 = vmatprep.subr.mxu0 0.0
        %472 = vmatpush1.msra.mxu0 %v414
        %473 = vmatprep.subr.mxu0 0.0
        %474 = vmatpush1.msra.mxu0 %v415
        %475 = vmatprep.subr.mxu0 0.0
        %476 = vmatpush1.msra.mxu0 %v416
        %477 = vmatprep.subr.mxu0 0.0
        %478 = vmatpush1.msra.mxu0 %v417
        %479 = vmatprep.subr.mxu0 0.0
        %480 = vmatpush1.msra.mxu0 %v418
        %481 = vmatprep.subr.mxu0 0.0
        %482 = vmatpush1.msra.mxu0 %v419
        %483 = vmatprep.subr.mxu0 0.0
        %484 = vmatpush1.msra.mxu0 %v420
        %485 = vmatprep.subr.mxu0 0.0
        %486 = vmatpush1.msra.mxu0 %v421
        %487 = vmatprep.subr.mxu0 0.0
        %488 = vmatpush1.msra.mxu0 %v422
        %489 = vmatprep.subr.mxu0 0.0
        %490 = vmatpush1.msra.mxu0 %v423
        %491 = vmatprep.subr.mxu0 0.0
        %492 = vmatpush1.msra.mxu0 %v424
        %493 = vmatprep.subr.mxu0 0.0
        %494 = vmatpush1.msra.mxu0 %v425
        %495 = vmatprep.subr.mxu0 0.0
        %496 = vmatpush1.msra.mxu0 %v426
        %497 = vmatprep.subr.mxu0 0.0
        %498 = vmatpush1.msra.mxu0 %v427
        %499 = vmatprep.subr.mxu0 0.0
        %500 = vmatpush1.msra.mxu0 %v428
        %501 = vmatprep.subr.mxu0 0.0
        %502 = vmatpush1.msra.mxu0 %v429
        %503 = vmatprep.subr.mxu0 0.0
        %504 = vmatpush1.msra.mxu0 %v430
        %505 = vmatprep.subr.mxu0 0.0
        %506 = vmatpush1.msra.mxu0 %v431
        %507 = vmatprep.subr.mxu0 0.0
        %508 = vmatpush1.msra.mxu0 %v432
        %509 = vmatprep.subr.mxu0 0.0
        %510 = vmatpush1.msra.mxu0 %v433
        %511 = vmatprep.subr.mxu0 0.0
        %512 = vmatpush1.msra.mxu0 %v434
        %513 = vmatprep.subr.mxu0 0.0
        %514 = vmatpush1.msra.mxu0 %v435
        %515 = vmatprep.subr.mxu0 0.0
        %516 = vmatpush1.msra.mxu0 %v436
        %517 = vmatprep.subr.mxu0 0.0
        %518 = vmatpush1.msra.mxu0 %v437
        %519 = vmatprep.subr.mxu0 0.0
        %520 = vmatpush1.msra.mxu0 %v438
        %521 = vmatprep.subr.mxu0 0.0
        %522 = vmatpush1.msra.mxu0 %v439
        %523 = vmatprep.subr.mxu0 0.0
        %524 = vmatpush1.msra.mxu0 %v440
        %525 = vmatprep.subr.mxu0 0.0
        %526 = vmatpush1.msra.mxu0 %v441
        %527 = vmatprep.subr.mxu0 0.0
        %528 = vmatpush1.msra.mxu0 %v442
        %529 = vmatprep.subr.mxu0 0.0
        %530 = vmatpush1.msra.mxu0 %v443
        %531 = vmatprep.mubr.f32.mxu0 %v407
        %532 = vmatmul.mubr.f32.gmra.mrb[0].mxu0 %v406
        %v533 = vpop.f32.mrb[0].mxu0
        %v534 = vadd.f32 %v465, %v533
        %v535 = vpop.f32.mrb[0].mxu0
        %536 = vmatprep.mubr.f32.mxu0 %v410
        %537 = vmatmul.mubr.f32.gmra.mrb[0].mxu0 %v409
        %v538 = vpop.f32.mrb[0].mxu0
        %v539 = vadd.f32 %v465, %v538
        %v540 = vpop.f32.mrb[0].mxu0
        %541 = vdwg.mxu0
        %542 = vmatprep.subr.mxu0 0.0
        %543 = vmatpush1.msra.mxu0 %v444
        %544 = vmatprep.subr.mxu0 0.0
        %545 = vmatpush1.msra.mxu0 %v445
        %546 = vmatprep.subr.mxu0 0.0
        %547 = vmatpush1.msra.mxu0 %v446
        %548 = vmatprep.subr.mxu0 0.0
        %549 = vmatpush1.msra.mxu0 %v447
        %550 = vmatprep.subr.mxu0 0.0
        %551 = vmatpush1.msra.mxu0 %v448
        %552 = vmatprep.subr.mxu0 0.0
        %553 = vmatpush1.msra.mxu0 %v449
        %554 = vmatprep.subr.mxu0 0.0
        %555 = vmatpush1.msra.mxu0 %v450
        %556 = vmatprep.subr.mxu0 0.0
        %557 = vmatpush1.msra.mxu0 %v451
        %558 = vmatprep.subr.mxu0 0.0
        %559 = vmatpush1.msra.mxu0 %v452
        %560 = vmatprep.subr.mxu0 0.0
        %561 = vmatpush1.msra.mxu0 %v453
        %562 = vmatprep.subr.mxu0 0.0
        %563 = vmatpush1.msra.mxu0 %v454
        %564 = vmatprep.subr.mxu0 0.0
        %565 = vmatpush1.msra.mxu0 %v455
        %566 = vmatprep.subr.mxu0 0.0
        %567 = vmatpush1.msra.mxu0 %v456
        %568 = vmatprep.subr.mxu0 0.0
        %569 = vmatpush1.msra.mxu0 %v457
        %570 = vmatprep.subr.mxu0 0.0
        %571 = vmatpush1.msra.mxu0 %v458
        %572 = vmatprep.subr.mxu0 0.0
        %573 = vmatpush1.msra.mxu0 %v459
        %574 = vmatprep.subr.mxu0 0.0
        %575 = vmatpush1.msra.mxu0 0.0
        %576 = vmatprep.subr.mxu0 0.0
        %577 = vmatpush1.msra.mxu0 0.0
        %578 = vmatprep.subr.mxu0 0.0
        %579 = vmatpush1.msra.mxu0 0.0
        %580 = vmatprep.subr.mxu0 0.0
        %581 = vmatpush1.msra.mxu0 0.0
        %582 = vmatprep.subr.mxu0 0.0
        %583 = vmatpush1.msra.mxu0 0.0
        %584 = vmatprep.subr.mxu0 0.0
        %585 = vmatpush1.msra.mxu0 0.0
        %586 = vmatprep.subr.mxu0 0.0
        %587 = vmatpush1.msra.mxu0 0.0
        %588 = vmatprep.subr.mxu0 0.0
        %589 = vmatpush1.msra.mxu0 0.0
        %590 = vmatprep.subr.mxu0 0.0
        %591 = vmatpush1.msra.mxu0 0.0
        %592 = vmatprep.subr.mxu0 0.0
        %593 = vmatpush1.msra.mxu0 0.0
        %594 = vmatprep.subr.mxu0 0.0
        %595 = vmatpush1.msra.mxu0 0.0
        %596 = vmatprep.subr.mxu0 0.0
        %597 = vmatpush1.msra.mxu0 0.0
        %598 = vmatprep.subr.mxu0 0.0
        %599 = vmatpush1.msra.mxu0 0.0
        %600 = vmatprep.subr.mxu0 0.0
        %601 = vmatpush1.msra.mxu0 0.0
        %602 = vmatprep.subr.mxu0 0.0
        %603 = vmatpush1.msra.mxu0 0.0
        %604 = vmatprep.subr.mxu0 0.0
        %605 = vmatpush1.msra.mxu0 0.0
        %606 = vmatprep.mubr.f32.mxu0 0.0
        %607 = vmatmul.mubr.f32.gmra.mrb[0].mxu0 %v408
        %v608 = vpop.f32.mrb[0].mxu0
        %v609 = vadd.f32 %v534, %v608
        %v610 = vpop.f32.mrb[0].mxu0
        %611 = vmatprep.mubr.f32.mxu0 0.0
        %612 = vmatmul.mubr.f32.gmra.mrb[0].mxu0 %v411
        %v613 = vpop.f32.mrb[0].mxu0
        %v614 = vadd.f32 %v539, %v613
        %v615 = vpop.f32.mrb[0].mxu0
        %616 = vdwg.mxu0
        %v617 = vmax.f32 %v609, 0.0
        %v618 = vmax.f32 %v614, 0.0
        %619 = vst [vmem:[#allocation2] sm:$0xff] %v617
        %620 = vst [vmem:[#allocation2 + $0x8] sm:$0xff] %v618
        %s621 = scalar_lea.vmem %s350, 48 [#allocation3]
        %v622 = vld [vmem:[%s621] sm:$0xff]
        %v623 = vld [vmem:[%s621 + $0x8] sm:$0xff]
        %v624 = vld [vmem:[%s621 + $0x10] sm:$0xff]
        %v625 = vld [vmem:[%s621 + $0x18] sm:$0xff]
        %v626 = vld [vmem:[%s621 + $0x20] sm:$0xff]
        %v627 = vld [vmem:[%s621 + $0x28] sm:$0xff]
        %v628 = vld [vmem:[#allocation6] sm:$0xff]
        %v629 = vld [vmem:[#allocation6 + $0x8] sm:$0xff]
        %v630 = vld [vmem:[#allocation6 + $0x10] sm:$0xff]
        %v631 = vld [vmem:[#allocation6 + $0x18] sm:$0xff]
        %v632 = vld [vmem:[#allocation6 + $0x20] sm:$0xff]
        %v633 = vld [vmem:[#allocation6 + $0x28] sm:$0xff]
        %v634 = vld [vmem:[#allocation6 + $0x30] sm:$0xff]
        %v635 = vld [vmem:[#allocation6 + $0x38] sm:$0xff]
        %v636 = vld [vmem:[#allocation6 + $0x40] sm:$0xff]
        %v637 = vld [vmem:[#allocation6 + $0x48] sm:$0xff]
        %v638 = vld [vmem:[#allocation6 + $0x50] sm:$0xff]
        %v639 = vld [vmem:[#allocation6 + $0x58] sm:$0xff]
        %v640 = vld [vmem:[#allocation6 + $0x60] sm:$0xff]
        %v641 = vld [vmem:[#allocation6 + $0x68] sm:$0xff]
        %v642 = vld [vmem:[#allocation6 + $0x70] sm:$0xff]
        %v643 = vld [vmem:[#allocation6 + $0x78] sm:$0xff]
        %v644 = vld [vmem:[#allocation6 + $0x80] sm:$0xff]
        %v645 = vld [vmem:[#allocation6 + $0x88] sm:$0xff]
        %v646 = vld [vmem:[#allocation6 + $0x90] sm:$0xff]
        %v647 = vld [vmem:[#allocation6 + $0x98] sm:$0xff]
        %v648 = vld [vmem:[#allocation6 + $0xa0] sm:$0xff]
        %v649 = vld [vmem:[#allocation6 + $0xa8] sm:$0xff]
        %v650 = vld [vmem:[#allocation6 + $0xb0] sm:$0xff]
        %v651 = vld [vmem:[#allocation6 + $0xb8] sm:$0xff]
        %v652 = vld [vmem:[#allocation6 + $0xc0] sm:$0xff]
        %v653 = vld [vmem:[#allocation6 + $0xc8] sm:$0xff]
        %v654 = vld [vmem:[#allocation6 + $0xd0] sm:$0xff]
        %v655 = vld [vmem:[#allocation6 + $0xd8] sm:$0xff]
        %v656 = vld [vmem:[#allocation6 + $0xe0] sm:$0xff]
        %v657 = vld [vmem:[#allocation6 + $0xe8] sm:$0xff]
        %v658 = vld [vmem:[#allocation6 + $0xf0] sm:$0xff]
        %v659 = vld [vmem:[#allocation6 + $0xf8] sm:$0xff]
        %v660 = vld [vmem:[#allocation6 + $0x100] sm:$0xff]
        %v661 = vld [vmem:[#allocation6 + $0x108] sm:$0xff]
        %v662 = vld [vmem:[#allocation6 + $0x110] sm:$0xff]
        %v663 = vld [vmem:[#allocation6 + $0x118] sm:$0xff]
        %v664 = vld [vmem:[#allocation6 + $0x120] sm:$0xff]
        %v665 = vld [vmem:[#allocation6 + $0x128] sm:$0xff]
        %v666 = vld [vmem:[#allocation6 + $0x130] sm:$0xff]
        %v667 = vld [vmem:[#allocation6 + $0x138] sm:$0xff]
        %v668 = vld [vmem:[#allocation6 + $0x140] sm:$0xff]
        %v669 = vld [vmem:[#allocation6 + $0x148] sm:$0xff]
        %v670 = vld [vmem:[#allocation6 + $0x150] sm:$0xff]
        %v671 = vld [vmem:[#allocation6 + $0x158] sm:$0xff]
        %v672 = vld [vmem:[#allocation6 + $0x160] sm:$0xff]
        %v673 = vld [vmem:[#allocation6 + $0x168] sm:$0xff]
        %v674 = vld [vmem:[#allocation6 + $0x170] sm:$0xff]
        %v675 = vld [vmem:[#allocation6 + $0x178] sm:$0xff]
        %v676 = vld [vmem:[%s2] sm:$0x1]
        %v678 = vlaneseq
        %v679 = vshrl.u32 %v678, 7
        %v680 = vsub.s32 0, %v679
        %v681 = vrot.slane %v676, %v680
        %683 = vmatprep.subr.mxu0 0.0
        %684 = vmatpush1.msra.mxu0 %v628
        %685 = vmatprep.subr.mxu0 0.0
        %686 = vmatpush1.msra.mxu0 %v629
        %687 = vmatprep.subr.mxu0 0.0
        %688 = vmatpush1.msra.mxu0 %v630
        %689 = vmatprep.subr.mxu0 0.0
        %690 = vmatpush1.msra.mxu0 %v631
        %691 = vmatprep.subr.mxu0 0.0
        %692 = vmatpush1.msra.mxu0 %v632
        %693 = vmatprep.subr.mxu0 0.0
        %694 = vmatpush1.msra.mxu0 %v633
        %695 = vmatprep.subr.mxu0 0.0
        %696 = vmatpush1.msra.mxu0 %v634
        %697 = vmatprep.subr.mxu0 0.0
        %698 = vmatpush1.msra.mxu0 %v635
        %699 = vmatprep.subr.mxu0 0.0
        %700 = vmatpush1.msra.mxu0 %v636
        %701 = vmatprep.subr.mxu0 0.0
        %702 = vmatpush1.msra.mxu0 %v637
        %703 = vmatprep.subr.mxu0 0.0
        %704 = vmatpush1.msra.mxu0 %v638
        %705 = vmatprep.subr.mxu0 0.0
        %706 = vmatpush1.msra.mxu0 %v639
        %707 = vmatprep.subr.mxu0 0.0
        %708 = vmatpush1.msra.mxu0 %v640
        %709 = vmatprep.subr.mxu0 0.0
        %710 = vmatpush1.msra.mxu0 %v641
        %711 = vmatprep.subr.mxu0 0.0
        %712 = vmatpush1.msra.mxu0 %v642
        %713 = vmatprep.subr.mxu0 0.0
        %714 = vmatpush1.msra.mxu0 %v643
        %715 = vmatprep.subr.mxu0 0.0
        %716 = vmatpush1.msra.mxu0 %v644
        %717 = vmatprep.subr.mxu0 0.0
        %718 = vmatpush1.msra.mxu0 %v645
        %719 = vmatprep.subr.mxu0 0.0
        %720 = vmatpush1.msra.mxu0 %v646
        %721 = vmatprep.subr.mxu0 0.0
        %722 = vmatpush1.msra.mxu0 %v647
        %723 = vmatprep.subr.mxu0 0.0
        %724 = vmatpush1.msra.mxu0 %v648
        %725 = vmatprep.subr.mxu0 0.0
        %726 = vmatpush1.msra.mxu0 %v649
        %727 = vmatprep.subr.mxu0 0.0
        %728 = vmatpush1.msra.mxu0 %v650
        %729 = vmatprep.subr.mxu0 0.0
        %730 = vmatpush1.msra.mxu0 %v651
        %731 = vmatprep.subr.mxu0 0.0
        %732 = vmatpush1.msra.mxu0 %v652
        %733 = vmatprep.subr.mxu0 0.0
        %734 = vmatpush1.msra.mxu0 %v653
        %735 = vmatprep.subr.mxu0 0.0
        %736 = vmatpush1.msra.mxu0 %v654
        %737 = vmatprep.subr.mxu0 0.0
        %738 = vmatpush1.msra.mxu0 %v655
        %739 = vmatprep.subr.mxu0 0.0
        %740 = vmatpush1.msra.mxu0 %v656
        %741 = vmatprep.subr.mxu0 0.0
        %742 = vmatpush1.msra.mxu0 %v657
        %743 = vmatprep.subr.mxu0 0.0
        %744 = vmatpush1.msra.mxu0 %v658
        %745 = vmatprep.subr.mxu0 0.0
        %746 = vmatpush1.msra.mxu0 %v659
        %747 = vmatprep.mubr.f32.mxu0 %v623
        %748 = vmatmul.mubr.f32.gmra.mrb[0].mxu0 %v622
        %v749 = vpop.f32.mrb[0].mxu0
        %v750 = vadd.f32 %v681, %v749
        %v751 = vpop.f32.mrb[0].mxu0
        %752 = vmatprep.mubr.f32.mxu0 %v626
        %753 = vmatmul.mubr.f32.gmra.mrb[0].mxu0 %v625
        %v754 = vpop.f32.mrb[0].mxu0
        %v755 = vadd.f32 %v681, %v754
        %v756 = vpop.f32.mrb[0].mxu0
        %757 = vdwg.mxu0
        %758 = vmatprep.subr.mxu0 0.0
        %759 = vmatpush1.msra.mxu0 %v660
        %760 = vmatprep.subr.mxu0 0.0
        %761 = vmatpush1.msra.mxu0 %v661
        %762 = vmatprep.subr.mxu0 0.0
        %763 = vmatpush1.msra.mxu0 %v662
        %764 = vmatprep.subr.mxu0 0.0
        %765 = vmatpush1.msra.mxu0 %v663
        %766 = vmatprep.subr.mxu0 0.0
        %767 = vmatpush1.msra.mxu0 %v664
        %768 = vmatprep.subr.mxu0 0.0
        %769 = vmatpush1.msra.mxu0 %v665
        %770 = vmatprep.subr.mxu0 0.0
        %771 = vmatpush1.msra.mxu0 %v666
        %772 = vmatprep.subr.mxu0 0.0
        %773 = vmatpush1.msra.mxu0 %v667
        %774 = vmatprep.subr.mxu0 0.0
        %775 = vmatpush1.msra.mxu0 %v668
        %776 = vmatprep.subr.mxu0 0.0
        %777 = vmatpush1.msra.mxu0 %v669
        %778 = vmatprep.subr.mxu0 0.0
        %779 = vmatpush1.msra.mxu0 %v670
        %780 = vmatprep.subr.mxu0 0.0
        %781 = vmatpush1.msra.mxu0 %v671
        %782 = vmatprep.subr.mxu0 0.0
        %783 = vmatpush1.msra.mxu0 %v672
        %784 = vmatprep.subr.mxu0 0.0
        %785 = vmatpush1.msra.mxu0 %v673
        %786 = vmatprep.subr.mxu0 0.0
        %787 = vmatpush1.msra.mxu0 %v674
        %788 = vmatprep.subr.mxu0 0.0
        %789 = vmatpush1.msra.mxu0 %v675
        %790 = vmatprep.subr.mxu0 0.0
        %791 = vmatpush1.msra.mxu0 0.0
        %792 = vmatprep.subr.mxu0 0.0
        %793 = vmatpush1.msra.mxu0 0.0
        %794 = vmatprep.subr.mxu0 0.0
        %795 = vmatpush1.msra.mxu0 0.0
        %796 = vmatprep.subr.mxu0 0.0
        %797 = vmatpush1.msra.mxu0 0.0
        %798 = vmatprep.subr.mxu0 0.0
        %799 = vmatpush1.msra.mxu0 0.0
        %800 = vmatprep.subr.mxu0 0.0
        %801 = vmatpush1.msra.mxu0 0.0
        %802 = vmatprep.subr.mxu0 0.0
        %803 = vmatpush1.msra.mxu0 0.0
        %804 = vmatprep.subr.mxu0 0.0
        %805 = vmatpush1.msra.mxu0 0.0
        %806 = vmatprep.subr.mxu0 0.0
        %807 = vmatpush1.msra.mxu0 0.0
        %808 = vmatprep.subr.mxu0 0.0
        %809 = vmatpush1.msra.mxu0 0.0
        %810 = vmatprep.subr.mxu0 0.0
        %811 = vmatpush1.msra.mxu0 0.0
        %812 = vmatprep.subr.mxu0 0.0
        %813 = vmatpush1.msra.mxu0 0.0
        %814 = vmatprep.subr.mxu0 0.0
        %815 = vmatpush1.msra.mxu0 0.0
        %816 = vmatprep.subr.mxu0 0.0
        %817 = vmatpush1.msra.mxu0 0.0
        %818 = vmatprep.subr.mxu0 0.0
        %819 = vmatpush1.msra.mxu0 0.0
        %820 = vmatprep.subr.mxu0 0.0
        %821 = vmatpush1.msra.mxu0 0.0
        %822 = vmatprep.mubr.f32.mxu0 0.0
        %823 = vmatmul.mubr.f32.gmra.mrb[0].mxu0 %v624
        %v824 = vpop.f32.mrb[0].mxu0
        %v825 = vadd.f32 %v750, %v824
        %v826 = vpop.f32.mrb[0].mxu0
        %827 = vmatprep.mubr.f32.mxu0 0.0
        %828 = vmatmul.mubr.f32.gmra.mrb[0].mxu0 %v627
        %v829 = vpop.f32.mrb[0].mxu0
        %v830 = vadd.f32 %v755, %v829
        %v831 = vpop.f32.mrb[0].mxu0
        %832 = vdwg.mxu0
        %v833 = vmax.f32 %v825, 0.0
        %v834 = vmax.f32 %v830, 0.0
        %s835 = scalar_lea.vmem [#allocation2], 16
        %836 = vst [vmem:[%s835] sm:$0xff] %v833
        %837 = vst [vmem:[%s835 + $0x8] sm:$0xff] %v834
        %s838 = scalar_lea.vmem %s350, 96 [#allocation3]
        %v839 = vld [vmem:[%s838] sm:$0xff]
        %v840 = vld [vmem:[%s838 + $0x8] sm:$0xff]
        %v841 = vld [vmem:[%s838 + $0x10] sm:$0xff]
        %v842 = vld [vmem:[%s838 + $0x18] sm:$0xff]
        %v843 = vld [vmem:[%s838 + $0x20] sm:$0xff]
        %v844 = vld [vmem:[%s838 + $0x28] sm:$0xff]
        %v845 = vld [vmem:[#allocation6] sm:$0xff]
        %v846 = vld [vmem:[#allocation6 + $0x8] sm:$0xff]
        %v847 = vld [vmem:[#allocation6 + $0x10] sm:$0xff]
        %v848 = vld [vmem:[#allocation6 + $0x18] sm:$0xff]
        %v849 = vld [vmem:[#allocation6 + $0x20] sm:$0xff]
        %v850 = vld [vmem:[#allocation6 + $0x28] sm:$0xff]
        %v851 = vld [vmem:[#allocation6 + $0x30] sm:$0xff]
        %v852 = vld [vmem:[#allocation6 + $0x38] sm:$0xff]
        %v853 = vld [vmem:[#allocation6 + $0x40] sm:$0xff]
        %v854 = vld [vmem:[#allocation6 + $0x48] sm:$0xff]
        %v855 = vld [vmem:[#allocation6 + $0x50] sm:$0xff]
        %v856 = vld [vmem:[#allocation6 + $0x58] sm:$0xff]
        %v857 = vld [vmem:[#allocation6 + $0x60] sm:$0xff]
        %v858 = vld [vmem:[#allocation6 + $0x68] sm:$0xff]
        %v859 = vld [vmem:[#allocation6 + $0x70] sm:$0xff]
        %v860 = vld [vmem:[#allocation6 + $0x78] sm:$0xff]
        %v861 = vld [vmem:[#allocation6 + $0x80] sm:$0xff]
        %v862 = vld [vmem:[#allocation6 + $0x88] sm:$0xff]
        %v863 = vld [vmem:[#allocation6 + $0x90] sm:$0xff]
        %v864 = vld [vmem:[#allocation6 + $0x98] sm:$0xff]
        %v865 = vld [vmem:[#allocation6 + $0xa0] sm:$0xff]
        %v866 = vld [vmem:[#allocation6 + $0xa8] sm:$0xff]
        %v867 = vld [vmem:[#allocation6 + $0xb0] sm:$0xff]
        %v868 = vld [vmem:[#allocation6 + $0xb8] sm:$0xff]
        %v869 = vld [vmem:[#allocation6 + $0xc0] sm:$0xff]
        %v870 = vld [vmem:[#allocation6 + $0xc8] sm:$0xff]
        %v871 = vld [vmem:[#allocation6 + $0xd0] sm:$0xff]
        %v872 = vld [vmem:[#allocation6 + $0xd8] sm:$0xff]
        %v873 = vld [vmem:[#allocation6 + $0xe0] sm:$0xff]
        %v874 = vld [vmem:[#allocation6 + $0xe8] sm:$0xff]
        %v875 = vld [vmem:[#allocation6 + $0xf0] sm:$0xff]
        %v876 = vld [vmem:[#allocation6 + $0xf8] sm:$0xff]
        %v877 = vld [vmem:[#allocation6 + $0x100] sm:$0xff]
        %v878 = vld [vmem:[#allocation6 + $0x108] sm:$0xff]
        %v879 = vld [vmem:[#allocation6 + $0x110] sm:$0xff]
        %v880 = vld [vmem:[#allocation6 + $0x118] sm:$0xff]
        %v881 = vld [vmem:[#allocation6 + $0x120] sm:$0xff]
        %v882 = vld [vmem:[#allocation6 + $0x128] sm:$0xff]
        %v883 = vld [vmem:[#allocation6 + $0x130] sm:$0xff]
        %v884 = vld [vmem:[#allocation6 + $0x138] sm:$0xff]
        %v885 = vld [vmem:[#allocation6 + $0x140] sm:$0xff]
        %v886 = vld [vmem:[#allocation6 + $0x148] sm:$0xff]
        %v887 = vld [vmem:[#allocation6 + $0x150] sm:$0xff]
        %v888 = vld [vmem:[#allocation6 + $0x158] sm:$0xff]
        %v889 = vld [vmem:[#allocation6 + $0x160] sm:$0xff]
        %v890 = vld [vmem:[#allocation6 + $0x168] sm:$0xff]
        %v891 = vld [vmem:[#allocation6 + $0x170] sm:$0xff]
        %v892 = vld [vmem:[#allocation6 + $0x178] sm:$0xff]
        %v893 = vld [vmem:[%s2] sm:$0x1]
        %v895 = vlaneseq
        %v896 = vshrl.u32 %v895, 7
        %v897 = vsub.s32 0, %v896
        %v898 = vrot.slane %v893, %v897
        %900 = vmatprep.subr.mxu0 0.0
        %901 = vmatpush1.msra.mxu0 %v845
        %902 = vmatprep.subr.mxu0 0.0
        %903 = vmatpush1.msra.mxu0 %v846
        %904 = vmatprep.subr.mxu0 0.0
        %905 = vmatpush1.msra.mxu0 %v847
        %906 = vmatprep.subr.mxu0 0.0
        %907 = vmatpush1.msra.mxu0 %v848
        %908 = vmatprep.subr.mxu0 0.0
        %909 = vmatpush1.msra.mxu0 %v849
        %910 = vmatprep.subr.mxu0 0.0
        %911 = vmatpush1.msra.mxu0 %v850
        %912 = vmatprep.subr.mxu0 0.0
        %913 = vmatpush1.msra.mxu0 %v851
        %914 = vmatprep.subr.mxu0 0.0
        %915 = vmatpush1.msra.mxu0 %v852
        %916 = vmatprep.subr.mxu0 0.0
        %917 = vmatpush1.msra.mxu0 %v853
        %918 = vmatprep.subr.mxu0 0.0
        %919 = vmatpush1.msra.mxu0 %v854
        %920 = vmatprep.subr.mxu0 0.0
        %921 = vmatpush1.msra.mxu0 %v855
        %922 = vmatprep.subr.mxu0 0.0
        %923 = vmatpush1.msra.mxu0 %v856
        %924 = vmatprep.subr.mxu0 0.0
        %925 = vmatpush1.msra.mxu0 %v857
        %926 = vmatprep.subr.mxu0 0.0
        %927 = vmatpush1.msra.mxu0 %v858
        %928 = vmatprep.subr.mxu0 0.0
        %929 = vmatpush1.msra.mxu0 %v859
        %930 = vmatprep.subr.mxu0 0.0
        %931 = vmatpush1.msra.mxu0 %v860
        %932 = vmatprep.subr.mxu0 0.0
        %933 = vmatpush1.msra.mxu0 %v861
        %934 = vmatprep.subr.mxu0 0.0
        %935 = vmatpush1.msra.mxu0 %v862
        %936 = vmatprep.subr.mxu0 0.0
        %937 = vmatpush1.msra.mxu0 %v863
        %938 = vmatprep.subr.mxu0 0.0
        %939 = vmatpush1.msra.mxu0 %v864
        %940 = vmatprep.subr.mxu0 0.0
        %941 = vmatpush1.msra.mxu0 %v865
        %942 = vmatprep.subr.mxu0 0.0
        %943 = vmatpush1.msra.mxu0 %v866
        %944 = vmatprep.subr.mxu0 0.0
        %945 = vmatpush1.msra.mxu0 %v867
        %946 = vmatprep.subr.mxu0 0.0
        %947 = vmatpush1.msra.mxu0 %v868
        %948 = vmatprep.subr.mxu0 0.0
        %949 = vmatpush1.msra.mxu0 %v869
        %950 = vmatprep.subr.mxu0 0.0
        %951 = vmatpush1.msra.mxu0 %v870
        %952 = vmatprep.subr.mxu0 0.0
        %953 = vmatpush1.msra.mxu0 %v871
        %954 = vmatprep.subr.mxu0 0.0
        %955 = vmatpush1.msra.mxu0 %v872
        %956 = vmatprep.subr.mxu0 0.0
        %957 = vmatpush1.msra.mxu0 %v873
        %958 = vmatprep.subr.mxu0 0.0
        %959 = vmatpush1.msra.mxu0 %v874
        %960 = vmatprep.subr.mxu0 0.0
        %961 = vmatpush1.msra.mxu0 %v875
        %962 = vmatprep.subr.mxu0 0.0
        %963 = vmatpush1.msra.mxu0 %v876
        %964 = vmatprep.mubr.f32.mxu0 %v840
        %965 = vmatmul.mubr.f32.gmra.mrb[0].mxu0 %v839
        %v966 = vpop.f32.mrb[0].mxu0
        %v967 = vadd.f32 %v898, %v966
        %v968 = vpop.f32.mrb[0].mxu0
        %969 = vmatprep.mubr.f32.mxu0 %v843
        %970 = vmatmul.mubr.f32.gmra.mrb[0].mxu0 %v842
        %v971 = vpop.f32.mrb[0].mxu0
        %v972 = vadd.f32 %v898, %v971
        %v973 = vpop.f32.mrb[0].mxu0
        %974 = vdwg.mxu0
        %975 = vmatprep.subr.mxu0 0.0
        %976 = vmatpush1.msra.mxu0 %v877
        %977 = vmatprep.subr.mxu0 0.0
        %978 = vmatpush1.msra.mxu0 %v878
        %979 = vmatprep.subr.mxu0 0.0
        %980 = vmatpush1.msra.mxu0 %v879
        %981 = vmatprep.subr.mxu0 0.0
        %982 = vmatpush1.msra.mxu0 %v880
        %983 = vmatprep.subr.mxu0 0.0
        %984 = vmatpush1.msra.mxu0 %v881
        %985 = vmatprep.subr.mxu0 0.0
        %986 = vmatpush1.msra.mxu0 %v882
        %987 = vmatprep.subr.mxu0 0.0
        %988 = vmatpush1.msra.mxu0 %v883
        %989 = vmatprep.subr.mxu0 0.0
        %990 = vmatpush1.msra.mxu0 %v884
        %991 = vmatprep.subr.mxu0 0.0
        %992 = vmatpush1.msra.mxu0 %v885
        %993 = vmatprep.subr.mxu0 0.0
        %994 = vmatpush1.msra.mxu0 %v886
        %995 = vmatprep.subr.mxu0 0.0
        %996 = vmatpush1.msra.mxu0 %v887
        %997 = vmatprep.subr.mxu0 0.0
        %998 = vmatpush1.msra.mxu0 %v888
        %999 = vmatprep.subr.mxu0 0.0
        %1000 = vmatpush1.msra.mxu0 %v889
        %1001 = vmatprep.subr.mxu0 0.0
        %1002 = vmatpush1.msra.mxu0 %v890
        %1003 = vmatprep.subr.mxu0 0.0
        %1004 = vmatpush1.msra.mxu0 %v891
        %1005 = vmatprep.subr.mxu0 0.0
        %1006 = vmatpush1.msra.mxu0 %v892
        %1007 = vmatprep.subr.mxu0 0.0
        %1008 = vmatpush1.msra.mxu0 0.0
        %1009 = vmatprep.subr.mxu0 0.0
        %1010 = vmatpush1.msra.mxu0 0.0
        %1011 = vmatprep.subr.mxu0 0.0
        %1012 = vmatpush1.msra.mxu0 0.0
        %1013 = vmatprep.subr.mxu0 0.0
        %1014 = vmatpush1.msra.mxu0 0.0
        %1015 = vmatprep.subr.mxu0 0.0
        %1016 = vmatpush1.msra.mxu0 0.0
        %1017 = vmatprep.subr.mxu0 0.0
        %1018 = vmatpush1.msra.mxu0 0.0
        %1019 = vmatprep.subr.mxu0 0.0
        %1020 = vmatpush1.msra.mxu0 0.0
        %1021 = vmatprep.subr.mxu0 0.0
        %1022 = vmatpush1.msra.mxu0 0.0
        %1023 = vmatprep.subr.mxu0 0.0
        %1024 = vmatpush1.msra.mxu0 0.0
        %1025 = vmatprep.subr.mxu0 0.0
        %1026 = vmatpush1.msra.mxu0 0.0
        %1027 = vmatprep.subr.mxu0 0.0
        %1028 = vmatpush1.msra.mxu0 0.0
        %1029 = vmatprep.subr.mxu0 0.0
        %1030 = vmatpush1.msra.mxu0 0.0
        %1031 = vmatprep.subr.mxu0 0.0
        %1032 = vmatpush1.msra.mxu0 0.0
        %1033 = vmatprep.subr.mxu0 0.0
        %1034 = vmatpush1.msra.mxu0 0.0
        %1035 = vmatprep.subr.mxu0 0.0
        %1036 = vmatpush1.msra.mxu0 0.0
        %1037 = vmatprep.subr.mxu0 0.0
        %1038 = vmatpush1.msra.mxu0 0.0
        %1039 = vmatprep.mubr.f32.mxu0 0.0
        %1040 = vmatmul.mubr.f32.gmra.mrb[0].mxu0 %v841
        %v1041 = vpop.f32.mrb[0].mxu0
        %v1042 = vadd.f32 %v967, %v1041
        %v1043 = vpop.f32.mrb[0].mxu0
        %1044 = vmatprep.mubr.f32.mxu0 0.0
        %1045 = vmatmul.mubr.f32.gmra.mrb[0].mxu0 %v844
        %v1046 = vpop.f32.mrb[0].mxu0
        %v1047 = vadd.f32 %v972, %v1046
        %v1048 = vpop.f32.mrb[0].mxu0
        %1049 = vdwg.mxu0
        %v1050 = vmax.f32 %v1042, 0.0
        %v1051 = vmax.f32 %v1047, 0.0
        %s1052 = scalar_lea.vmem [#allocation2], 32
        %1053 = vst [vmem:[%s1052] sm:$0xff] %v1050
        %1054 = vst [vmem:[%s1052 + $0x8] sm:$0xff] %v1051
        %v1055 = vld [vmem:[#allocation2] sm:$0xff]
        %v1056 = vld [vmem:[#allocation8] sm:$0xff]
        %v1057 = vld [vmem:[#allocation8 + $0x8] sm:$0xff]
        %v1058 = vld [vmem:[#allocation8 + $0x10] sm:$0xff]
        %v1059 = vld [vmem:[#allocation8 + $0x18] sm:$0xff]
        %v1060 = vld [vmem:[#allocation8 + $0x20] sm:$0xff]
        %v1061 = vld [vmem:[#allocation8 + $0x28] sm:$0xff]
        %v1062 = vld [vmem:[#allocation8 + $0x30] sm:$0xff]
        %v1063 = vld [vmem:[#allocation8 + $0x38] sm:$0xff]
        %v1064 = vld [vmem:[#allocation8 + $0x40] sm:$0xff]
        %v1065 = vld [vmem:[#allocation8 + $0x48] sm:$0xff]
        %v1066 = vld [vmem:[#allocation8 + $0x50] sm:$0xff]
        %v1067 = vld [vmem:[#allocation8 + $0x58] sm:$0xff]
        %v1068 = vld [vmem:[#allocation8 + $0x60] sm:$0xff]
        %v1069 = vld [vmem:[#allocation8 + $0x68] sm:$0xff]
        %v1070 = vld [vmem:[#allocation8 + $0x70] sm:$0xff]
        %v1071 = vld [vmem:[#allocation8 + $0x78] sm:$0xff]
        %v1072 = vld [vmem:[%s835] sm:$0xff]
        %s1073 = scalar_lea.vmem [#allocation8], 128
        %v1074 = vld [vmem:[%s1073] sm:$0xff]
        %v1075 = vld [vmem:[%s1073 + $0x8] sm:$0xff]
        %v1076 = vld [vmem:[%s1073 + $0x10] sm:$0xff]
        %v1077 = vld [vmem:[%s1073 + $0x18] sm:$0xff]
        %v1078 = vld [vmem:[%s1073 + $0x20] sm:$0xff]
        %v1079 = vld [vmem:[%s1073 + $0x28] sm:$0xff]
        %v1080 = vld [vmem:[%s1073 + $0x30] sm:$0xff]
        %v1081 = vld [vmem:[%s1073 + $0x38] sm:$0xff]
        %v1082 = vld [vmem:[%s1073 + $0x40] sm:$0xff]
        %v1083 = vld [vmem:[%s1073 + $0x48] sm:$0xff]
        %v1084 = vld [vmem:[%s1073 + $0x50] sm:$0xff]
        %v1085 = vld [vmem:[%s1073 + $0x58] sm:$0xff]
        %v1086 = vld [vmem:[%s1073 + $0x60] sm:$0xff]
        %v1087 = vld [vmem:[%s1073 + $0x68] sm:$0xff]
        %v1088 = vld [vmem:[%s1073 + $0x70] sm:$0xff]
        %v1089 = vld [vmem:[%s1073 + $0x78] sm:$0xff]
        %1090 = vmatprep.subr.mxu0 0.0
        %1091 = vmatpush1.msra.mxu0 %v1074
        %1092 = vmatprep.subr.mxu0 0.0
        %1093 = vmatpush1.msra.mxu0 %v1075
        %1094 = vmatprep.subr.mxu0 0.0
        %1095 = vmatpush1.msra.mxu0 %v1076
        %1096 = vmatprep.subr.mxu0 0.0
        %1097 = vmatpush1.msra.mxu0 %v1077
        %1098 = vmatprep.subr.mxu0 0.0
        %1099 = vmatpush1.msra.mxu0 %v1078
        %1100 = vmatprep.subr.mxu0 0.0
        %1101 = vmatpush1.msra.mxu0 %v1079
        %1102 = vmatprep.subr.mxu0 0.0
        %1103 = vmatpush1.msra.mxu0 %v1080
        %1104 = vmatprep.subr.mxu0 0.0
        %1105 = vmatpush1.msra.mxu0 %v1081
        %1106 = vmatprep.subr.mxu0 0.0
        %1107 = vmatpush1.msra.mxu0 %v1082
        %1108 = vmatprep.subr.mxu0 0.0
        %1109 = vmatpush1.msra.mxu0 %v1083
        %1110 = vmatprep.subr.mxu0 0.0
        %1111 = vmatpush1.msra.mxu0 %v1084
        %1112 = vmatprep.subr.mxu0 0.0
        %1113 = vmatpush1.msra.mxu0 %v1085
        %1114 = vmatprep.subr.mxu0 0.0
        %1115 = vmatpush1.msra.mxu0 %v1086
        %1116 = vmatprep.subr.mxu0 0.0
        %1117 = vmatpush1.msra.mxu0 %v1087
        %1118 = vmatprep.subr.mxu0 0.0
        %1119 = vmatpush1.msra.mxu0 %v1088
        %1120 = vmatprep.subr.mxu0 0.0
        %1121 = vmatpush1.msra.mxu0 %v1089
        %1122 = vmatprep.subr.mxu0 0.0
        %1123 = vmatpush1.msra.mxu0 0.0
        %1124 = vmatprep.subr.mxu0 0.0
        %1125 = vmatpush1.msra.mxu0 0.0
        %1126 = vmatprep.subr.mxu0 0.0
        %1127 = vmatpush1.msra.mxu0 0.0
        %1128 = vmatprep.subr.mxu0 0.0
        %1129 = vmatpush1.msra.mxu0 0.0
        %1130 = vmatprep.subr.mxu0 0.0
        %1131 = vmatpush1.msra.mxu0 0.0
        %1132 = vmatprep.subr.mxu0 0.0
        %1133 = vmatpush1.msra.mxu0 0.0
        %1134 = vmatprep.subr.mxu0 0.0
        %1135 = vmatpush1.msra.mxu0 0.0
        %1136 = vmatprep.subr.mxu0 0.0
        %1137 = vmatpush1.msra.mxu0 0.0
        %1138 = vmatprep.subr.mxu0 0.0
        %1139 = vmatpush1.msra.mxu0 0.0
        %1140 = vmatprep.subr.mxu0 0.0
        %1141 = vmatpush1.msra.mxu0 0.0
        %1142 = vmatprep.subr.mxu0 0.0
        %1143 = vmatpush1.msra.mxu0 0.0
        %1144 = vmatprep.subr.mxu0 0.0
        %1145 = vmatpush1.msra.mxu0 0.0
        %1146 = vmatprep.subr.mxu0 0.0
        %1147 = vmatpush1.msra.mxu0 0.0
        %1148 = vmatprep.subr.mxu0 0.0
        %1149 = vmatpush1.msra.mxu0 0.0
        %1150 = vmatprep.subr.mxu0 0.0
        %1151 = vmatpush1.msra.mxu0 0.0
        %1152 = vmatprep.subr.mxu0 0.0
        %1153 = vmatpush1.msra.mxu0 0.0
        %1154 = vmatprep.mubr.f32.mxu0 0.0
        %1155 = vmatmul.mubr.f32.gmra.mrb[0].mxu0 %v1072
        %v1156 = vpop.f32.mrb[0].mxu0
        %v1157 = vadd.f32 0.0, %v1156
        %v1158 = vpop.f32.mrb[0].mxu0
        %1159 = vdwg.mxu0
        %1160 = vmatprep.subr.mxu0 0.0
        %1161 = vmatpush1.msra.mxu0 %v1056
        %1162 = vmatprep.subr.mxu0 0.0
        %1163 = vmatpush1.msra.mxu0 %v1057
        %1164 = vmatprep.subr.mxu0 0.0
        %1165 = vmatpush1.msra.mxu0 %v1058
        %1166 = vmatprep.subr.mxu0 0.0
        %1167 = vmatpush1.msra.mxu0 %v1059
        %1168 = vmatprep.subr.mxu0 0.0
        %1169 = vmatpush1.msra.mxu0 %v1060
        %1170 = vmatprep.subr.mxu0 0.0
        %1171 = vmatpush1.msra.mxu0 %v1061
        %1172 = vmatprep.subr.mxu0 0.0
        %1173 = vmatpush1.msra.mxu0 %v1062
        %1174 = vmatprep.subr.mxu0 0.0
        %1175 = vmatpush1.msra.mxu0 %v1063
        %1176 = vmatprep.subr.mxu0 0.0
        %1177 = vmatpush1.msra.mxu0 %v1064
        %1178 = vmatprep.subr.mxu0 0.0
        %1179 = vmatpush1.msra.mxu0 %v1065
        %1180 = vmatprep.subr.mxu0 0.0
        %1181 = vmatpush1.msra.mxu0 %v1066
        %1182 = vmatprep.subr.mxu0 0.0
        %1183 = vmatpush1.msra.mxu0 %v1067
        %1184 = vmatprep.subr.mxu0 0.0
        %1185 = vmatpush1.msra.mxu0 %v1068
        %1186 = vmatprep.subr.mxu0 0.0
        %1187 = vmatpush1.msra.mxu0 %v1069
        %1188 = vmatprep.subr.mxu0 0.0
        %1189 = vmatpush1.msra.mxu0 %v1070
        %1190 = vmatprep.subr.mxu0 0.0
        %1191 = vmatpush1.msra.mxu0 %v1071
        %1192 = vmatprep.subr.mxu0 0.0
        %1193 = vmatpush1.msra.mxu0 0.0
        %1194 = vmatprep.subr.mxu0 0.0
        %1195 = vmatpush1.msra.mxu0 0.0
        %1196 = vmatprep.subr.mxu0 0.0
        %1197 = vmatpush1.msra.mxu0 0.0
        %1198 = vmatprep.subr.mxu0 0.0
        %1199 = vmatpush1.msra.mxu0 0.0
        %1200 = vmatprep.subr.mxu0 0.0
        %1201 = vmatpush1.msra.mxu0 0.0
        %1202 = vmatprep.subr.mxu0 0.0
        %1203 = vmatpush1.msra.mxu0 0.0
        %1204 = vmatprep.subr.mxu0 0.0
        %1205 = vmatpush1.msra.mxu0 0.0
        %1206 = vmatprep.subr.mxu0 0.0
        %1207 = vmatpush1.msra.mxu0 0.0
        %1208 = vmatprep.subr.mxu0 0.0
        %1209 = vmatpush1.msra.mxu0 0.0
        %1210 = vmatprep.subr.mxu0 0.0
        %1211 = vmatpush1.msra.mxu0 0.0
        %1212 = vmatprep.subr.mxu0 0.0
        %1213 = vmatpush1.msra.mxu0 0.0
        %1214 = vmatprep.subr.mxu0 0.0
        %1215 = vmatpush1.msra.mxu0 0.0
        %1216 = vmatprep.subr.mxu0 0.0
        %1217 = vmatpush1.msra.mxu0 0.0
        %1218 = vmatprep.subr.mxu0 0.0
        %1219 = vmatpush1.msra.mxu0 0.0
        %1220 = vmatprep.subr.mxu0 0.0
        %1221 = vmatpush1.msra.mxu0 0.0
        %1222 = vmatprep.subr.mxu0 0.0
        %1223 = vmatpush1.msra.mxu0 0.0
        %1224 = vmatprep.mubr.f32.mxu0 0.0
        %1225 = vmatmul.mubr.f32.gmra.mrb[0].mxu0 %v1055
        %v1226 = vpop.f32.mrb[0].mxu0
        %v1227 = vadd.f32 %v1157, %v1226
        %v1228 = vpop.f32.mrb[0].mxu0
        %1229 = vdwg.mxu0
        %v1230 = vld [vmem:[%s1052] sm:$0xff]
        %s1231 = scalar_lea.vmem [#allocation8], 256
        %v1232 = vld [vmem:[%s1231] sm:$0xff]
        %v1233 = vld [vmem:[%s1231 + $0x8] sm:$0xff]
        %v1234 = vld [vmem:[%s1231 + $0x10] sm:$0xff]
        %v1235 = vld [vmem:[%s1231 + $0x18] sm:$0xff]
        %v1236 = vld [vmem:[%s1231 + $0x20] sm:$0xff]
        %v1237 = vld [vmem:[%s1231 + $0x28] sm:$0xff]
        %v1238 = vld [vmem:[%s1231 + $0x30] sm:$0xff]
        %v1239 = vld [vmem:[%s1231 + $0x38] sm:$0xff]
        %v1240 = vld [vmem:[%s1231 + $0x40] sm:$0xff]
        %v1241 = vld [vmem:[%s1231 + $0x48] sm:$0xff]
        %v1242 = vld [vmem:[%s1231 + $0x50] sm:$0xff]
        %v1243 = vld [vmem:[%s1231 + $0x58] sm:$0xff]
        %v1244 = vld [vmem:[%s1231 + $0x60] sm:$0xff]
        %v1245 = vld [vmem:[%s1231 + $0x68] sm:$0xff]
        %v1246 = vld [vmem:[%s1231 + $0x70] sm:$0xff]
        %v1247 = vld [vmem:[%s1231 + $0x78] sm:$0xff]
        %1248 = vmatprep.subr.mxu0 0.0
        %1249 = vmatpush1.msra.mxu0 %v1232
        %1250 = vmatprep.subr.mxu0 0.0
        %1251 = vmatpush1.msra.mxu0 %v1233
        %1252 = vmatprep.subr.mxu0 0.0
        %1253 = vmatpush1.msra.mxu0 %v1234
        %1254 = vmatprep.subr.mxu0 0.0
        %1255 = vmatpush1.msra.mxu0 %v1235
        %1256 = vmatprep.subr.mxu0 0.0
        %1257 = vmatpush1.msra.mxu0 %v1236
        %1258 = vmatprep.subr.mxu0 0.0
        %1259 = vmatpush1.msra.mxu0 %v1237
        %1260 = vmatprep.subr.mxu0 0.0
        %1261 = vmatpush1.msra.mxu0 %v1238
        %1262 = vmatprep.subr.mxu0 0.0
        %1263 = vmatpush1.msra.mxu0 %v1239
        %1264 = vmatprep.subr.mxu0 0.0
        %1265 = vmatpush1.msra.mxu0 %v1240
        %1266 = vmatprep.subr.mxu0 0.0
        %1267 = vmatpush1.msra.mxu0 %v1241
        %1268 = vmatprep.subr.mxu0 0.0
        %1269 = vmatpush1.msra.mxu0 %v1242
        %1270 = vmatprep.subr.mxu0 0.0
        %1271 = vmatpush1.msra.mxu0 %v1243
        %1272 = vmatprep.subr.mxu0 0.0
        %1273 = vmatpush1.msra.mxu0 %v1244
        %1274 = vmatprep.subr.mxu0 0.0
        %1275 = vmatpush1.msra.mxu0 %v1245
        %1276 = vmatprep.subr.mxu0 0.0
        %1277 = vmatpush1.msra.mxu0 %v1246
        %1278 = vmatprep.subr.mxu0 0.0
        %1279 = vmatpush1.msra.mxu0 %v1247
        %1280 = vmatprep.subr.mxu0 0.0
        %1281 = vmatpush1.msra.mxu0 0.0
        %1282 = vmatprep.subr.mxu0 0.0
        %1283 = vmatpush1.msra.mxu0 0.0
        %1284 = vmatprep.subr.mxu0 0.0
        %1285 = vmatpush1.msra.mxu0 0.0
        %1286 = vmatprep.subr.mxu0 0.0
        %1287 = vmatpush1.msra.mxu0 0.0
        %1288 = vmatprep.subr.mxu0 0.0
        %1289 = vmatpush1.msra.mxu0 0.0
        %1290 = vmatprep.subr.mxu0 0.0
        %1291 = vmatpush1.msra.mxu0 0.0
        %1292 = vmatprep.subr.mxu0 0.0
        %1293 = vmatpush1.msra.mxu0 0.0
        %1294 = vmatprep.subr.mxu0 0.0
        %1295 = vmatpush1.msra.mxu0 0.0
        %1296 = vmatprep.subr.mxu0 0.0
        %1297 = vmatpush1.msra.mxu0 0.0
        %1298 = vmatprep.subr.mxu0 0.0
        %1299 = vmatpush1.msra.mxu0 0.0
        %1300 = vmatprep.subr.mxu0 0.0
        %1301 = vmatpush1.msra.mxu0 0.0
        %1302 = vmatprep.subr.mxu0 0.0
        %1303 = vmatpush1.msra.mxu0 0.0
        %1304 = vmatprep.subr.mxu0 0.0
        %1305 = vmatpush1.msra.mxu0 0.0
        %1306 = vmatprep.subr.mxu0 0.0
        %1307 = vmatpush1.msra.mxu0 0.0
        %1308 = vmatprep.subr.mxu0 0.0
        %1309 = vmatpush1.msra.mxu0 0.0
        %1310 = vmatprep.subr.mxu0 0.0
        %1311 = vmatpush1.msra.mxu0 0.0
        %1312 = vmatprep.mubr.f32.mxu0 0.0
        %1313 = vmatmul.mubr.f32.gmra.mrb[0].mxu0 %v1230
        %v1314 = vpop.f32.mrb[0].mxu0
        %v1315 = vadd.f32 0.0, %v1314
        %v1316 = vpop.f32.mrb[0].mxu0
        %1317 = vdwg.mxu0
        %v1318 = vadd.f32 %v1227, %v1315
        %v1319 = vld [vmem:[#allocation2 + $0x1] sm:$0xff]
        %s1320 = scalar_lea.vmem [#allocation8], 384
        %v1321 = vld [vmem:[%s1320] sm:$0xff]
        %v1322 = vld [vmem:[%s1320 + $0x8] sm:$0xff]
        %v1323 = vld [vmem:[%s1320 + $0x10] sm:$0xff]
        %v1324 = vld [vmem:[%s1320 + $0x18] sm:$0xff]
        %v1325 = vld [vmem:[%s1320 + $0x20] sm:$0xff]
        %v1326 = vld [vmem:[%s1320 + $0x28] sm:$0xff]
        %v1327 = vld [vmem:[%s1320 + $0x30] sm:$0xff]
        %v1328 = vld [vmem:[%s1320 + $0x38] sm:$0xff]
        %v1329 = vld [vmem:[%s1320 + $0x40] sm:$0xff]
        %v1330 = vld [vmem:[%s1320 + $0x48] sm:$0xff]
        %v1331 = vld [vmem:[%s1320 + $0x50] sm:$0xff]
        %v1332 = vld [vmem:[%s1320 + $0x58] sm:$0xff]
        %v1333 = vld [vmem:[%s1320 + $0x60] sm:$0xff]
        %v1334 = vld [vmem:[%s1320 + $0x68] sm:$0xff]
        %v1335 = vld [vmem:[%s1320 + $0x70] sm:$0xff]
        %v1336 = vld [vmem:[%s1320 + $0x78] sm:$0xff]
        %1337 = vmatprep.subr.mxu0 0.0
        %1338 = vmatpush1.msra.mxu0 %v1321
        %1339 = vmatprep.subr.mxu0 0.0
        %1340 = vmatpush1.msra.mxu0 %v1322
        %1341 = vmatprep.subr.mxu0 0.0
        %1342 = vmatpush1.msra.mxu0 %v1323
        %1343 = vmatprep.subr.mxu0 0.0
        %1344 = vmatpush1.msra.mxu0 %v1324
        %1345 = vmatprep.subr.mxu0 0.0
        %1346 = vmatpush1.msra.mxu0 %v1325
        %1347 = vmatprep.subr.mxu0 0.0
        %1348 = vmatpush1.msra.mxu0 %v1326
        %1349 = vmatprep.subr.mxu0 0.0
        %1350 = vmatpush1.msra.mxu0 %v1327
        %1351 = vmatprep.subr.mxu0 0.0
        %1352 = vmatpush1.msra.mxu0 %v1328
        %1353 = vmatprep.subr.mxu0 0.0
        %1354 = vmatpush1.msra.mxu0 %v1329
        %1355 = vmatprep.subr.mxu0 0.0
        %1356 = vmatpush1.msra.mxu0 %v1330
        %1357 = vmatprep.subr.mxu0 0.0
        %1358 = vmatpush1.msra.mxu0 %v1331
        %1359 = vmatprep.subr.mxu0 0.0
        %1360 = vmatpush1.msra.mxu0 %v1332
        %1361 = vmatprep.subr.mxu0 0.0
        %1362 = vmatpush1.msra.mxu0 %v1333
        %1363 = vmatprep.subr.mxu0 0.0
        %1364 = vmatpush1.msra.mxu0 %v1334
        %1365 = vmatprep.subr.mxu0 0.0
        %1366 = vmatpush1.msra.mxu0 %v1335
        %1367 = vmatprep.subr.mxu0 0.0
        %1368 = vmatpush1.msra.mxu0 %v1336
        %1369 = vmatprep.subr.mxu0 0.0
        %1370 = vmatpush1.msra.mxu0 0.0
        %1371 = vmatprep.subr.mxu0 0.0
        %1372 = vmatpush1.msra.mxu0 0.0
        %1373 = vmatprep.subr.mxu0 0.0
        %1374 = vmatpush1.msra.mxu0 0.0
        %1375 = vmatprep.subr.mxu0 0.0
        %1376 = vmatpush1.msra.mxu0 0.0
        %1377 = vmatprep.subr.mxu0 0.0
        %1378 = vmatpush1.msra.mxu0 0.0
        %1379 = vmatprep.subr.mxu0 0.0
        %1380 = vmatpush1.msra.mxu0 0.0
        %1381 = vmatprep.subr.mxu0 0.0
        %1382 = vmatpush1.msra.mxu0 0.0
        %1383 = vmatprep.subr.mxu0 0.0
        %1384 = vmatpush1.msra.mxu0 0.0
        %1385 = vmatprep.subr.mxu0 0.0
        %1386 = vmatpush1.msra.mxu0 0.0
        %1387 = vmatprep.subr.mxu0 0.0
        %1388 = vmatpush1.msra.mxu0 0.0
        %1389 = vmatprep.subr.mxu0 0.0
        %1390 = vmatpush1.msra.mxu0 0.0
        %1391 = vmatprep.subr.mxu0 0.0
        %1392 = vmatpush1.msra.mxu0 0.0
        %1393 = vmatprep.subr.mxu0 0.0
        %1394 = vmatpush1.msra.mxu0 0.0
        %1395 = vmatprep.subr.mxu0 0.0
        %1396 = vmatpush1.msra.mxu0 0.0
        %1397 = vmatprep.subr.mxu0 0.0
        %1398 = vmatpush1.msra.mxu0 0.0
        %1399 = vmatprep.subr.mxu0 0.0
        %1400 = vmatpush1.msra.mxu0 0.0
        %1401 = vmatprep.mubr.f32.mxu0 0.0
        %1402 = vmatmul.mubr.f32.gmra.mrb[0].mxu0 %v1319
        %v1403 = vpop.f32.mrb[0].mxu0
        %v1404 = vadd.f32 0.0, %v1403
        %v1405 = vpop.f32.mrb[0].mxu0
        %1406 = vdwg.mxu0
        %v1407 = vadd.f32 %v1318, %v1404
        %v1408 = vld [vmem:[%s835 + $0x1] sm:$0xff]
        %s1409 = scalar_lea.vmem [#allocation8], 512
        %v1410 = vld [vmem:[%s1409] sm:$0xff]
        %v1411 = vld [vmem:[%s1409 + $0x8] sm:$0xff]
        %v1412 = vld [vmem:[%s1409 + $0x10] sm:$0xff]
        %v1413 = vld [vmem:[%s1409 + $0x18] sm:$0xff]
        %v1414 = vld [vmem:[%s1409 + $0x20] sm:$0xff]
        %v1415 = vld [vmem:[%s1409 + $0x28] sm:$0xff]
        %v1416 = vld [vmem:[%s1409 + $0x30] sm:$0xff]
        %v1417 = vld [vmem:[%s1409 + $0x38] sm:$0xff]
        %v1418 = vld [vmem:[%s1409 + $0x40] sm:$0xff]
        %v1419 = vld [vmem:[%s1409 + $0x48] sm:$0xff]
        %v1420 = vld [vmem:[%s1409 + $0x50] sm:$0xff]
        %v1421 = vld [vmem:[%s1409 + $0x58] sm:$0xff]
        %v1422 = vld [vmem:[%s1409 + $0x60] sm:$0xff]
        %v1423 = vld [vmem:[%s1409 + $0x68] sm:$0xff]
        %v1424 = vld [vmem:[%s1409 + $0x70] sm:$0xff]
        %v1425 = vld [vmem:[%s1409 + $0x78] sm:$0xff]
        %1426 = vmatprep.subr.mxu0 0.0
        %1427 = vmatpush1.msra.mxu0 %v1410
        %1428 = vmatprep.subr.mxu0 0.0
        %1429 = vmatpush1.msra.mxu0 %v1411
        %1430 = vmatprep.subr.mxu0 0.0
        %1431 = vmatpush1.msra.mxu0 %v1412
        %1432 = vmatprep.subr.mxu0 0.0
        %1433 = vmatpush1.msra.mxu0 %v1413
        %1434 = vmatprep.subr.mxu0 0.0
        %1435 = vmatpush1.msra.mxu0 %v1414
        %1436 = vmatprep.subr.mxu0 0.0
        %1437 = vmatpush1.msra.mxu0 %v1415
        %1438 = vmatprep.subr.mxu0 0.0
        %1439 = vmatpush1.msra.mxu0 %v1416
        %1440 = vmatprep.subr.mxu0 0.0
        %1441 = vmatpush1.msra.mxu0 %v1417
        %1442 = vmatprep.subr.mxu0 0.0
        %1443 = vmatpush1.msra.mxu0 %v1418
        %1444 = vmatprep.subr.mxu0 0.0
        %1445 = vmatpush1.msra.mxu0 %v1419
        %1446 = vmatprep.subr.mxu0 0.0
        %1447 = vmatpush1.msra.mxu0 %v1420
        %1448 = vmatprep.subr.mxu0 0.0
        %1449 = vmatpush1.msra.mxu0 %v1421
        %1450 = vmatprep.subr.mxu0 0.0
        %1451 = vmatpush1.msra.mxu0 %v1422
        %1452 = vmatprep.subr.mxu0 0.0
        %1453 = vmatpush1.msra.mxu0 %v1423
        %1454 = vmatprep.subr.mxu0 0.0
        %1455 = vmatpush1.msra.mxu0 %v1424
        %1456 = vmatprep.subr.mxu0 0.0
        %1457 = vmatpush1.msra.mxu0 %v1425
        %1458 = vmatprep.subr.mxu0 0.0
        %1459 = vmatpush1.msra.mxu0 0.0
        %1460 = vmatprep.subr.mxu0 0.0
        %1461 = vmatpush1.msra.mxu0 0.0
        %1462 = vmatprep.subr.mxu0 0.0
        %1463 = vmatpush1.msra.mxu0 0.0
        %1464 = vmatprep.subr.mxu0 0.0
        %1465 = vmatpush1.msra.mxu0 0.0
        %1466 = vmatprep.subr.mxu0 0.0
        %1467 = vmatpush1.msra.mxu0 0.0
        %1468 = vmatprep.subr.mxu0 0.0
        %1469 = vmatpush1.msra.mxu0 0.0
        %1470 = vmatprep.subr.mxu0 0.0
        %1471 = vmatpush1.msra.mxu0 0.0
        %1472 = vmatprep.subr.mxu0 0.0
        %1473 = vmatpush1.msra.mxu0 0.0
        %1474 = vmatprep.subr.mxu0 0.0
        %1475 = vmatpush1.msra.mxu0 0.0
        %1476 = vmatprep.subr.mxu0 0.0
        %1477 = vmatpush1.msra.mxu0 0.0
        %1478 = vmatprep.subr.mxu0 0.0
        %1479 = vmatpush1.msra.mxu0 0.0
        %1480 = vmatprep.subr.mxu0 0.0
        %1481 = vmatpush1.msra.mxu0 0.0
        %1482 = vmatprep.subr.mxu0 0.0
        %1483 = vmatpush1.msra.mxu0 0.0
        %1484 = vmatprep.subr.mxu0 0.0
        %1485 = vmatpush1.msra.mxu0 0.0
        %1486 = vmatprep.subr.mxu0 0.0
        %1487 = vmatpush1.msra.mxu0 0.0
        %1488 = vmatprep.subr.mxu0 0.0
        %1489 = vmatpush1.msra.mxu0 0.0
        %1490 = vmatprep.mubr.f32.mxu0 0.0
        %1491 = vmatmul.mubr.f32.gmra.mrb[0].mxu0 %v1408
        %v1492 = vpop.f32.mrb[0].mxu0
        %v1493 = vadd.f32 0.0, %v1492
        %v1494 = vpop.f32.mrb[0].mxu0
        %1495 = vdwg.mxu0
        %v1496 = vadd.f32 %v1407, %v1493
        %v1497 = vld [vmem:[%s4] sm:$0x1]
        %v1499 = vlaneseq
        %v1500 = vshrl.u32 %v1499, 7
        %v1501 = vsub.s32 0, %v1500
        %v1502 = vrot.slane %v1497, %v1501
        %v1504 = vadd.f32 %v1496, %v1502
        %v1505 = vmax.f32 %v1504, 0.0
        %v1506 = vld [vmem:[#allocation9] sm:$0xff]
        %v1507 = vld [vmem:[#allocation9 + $0x8] sm:$0xff]
        %v1508 = vld [vmem:[#allocation9 + $0x10] sm:$0xff]
        %v1509 = vld [vmem:[#allocation9 + $0x18] sm:$0xff]
        %v1510 = vld [vmem:[#allocation9 + $0x20] sm:$0xff]
        %v1511 = vld [vmem:[#allocation9 + $0x28] sm:$0xff]
        %v1512 = vld [vmem:[#allocation9 + $0x30] sm:$0xff]
        %v1513 = vld [vmem:[#allocation9 + $0x38] sm:$0xff]
        %v1514 = vld [vmem:[#allocation9 + $0x40] sm:$0xff]
        %v1515 = vld [vmem:[#allocation9 + $0x48] sm:$0xff]
        %v1516 = vld [vmem:[#allocation9 + $0x50] sm:$0xff]
        %v1517 = vld [vmem:[#allocation9 + $0x58] sm:$0xff]
        %v1518 = vld [vmem:[#allocation9 + $0x60] sm:$0xff]
        %v1519 = vld [vmem:[#allocation9 + $0x68] sm:$0xff]
        %v1520 = vld [vmem:[#allocation9 + $0x70] sm:$0xff]
        %v1521 = vld [vmem:[#allocation9 + $0x78] sm:$0xff]
        %v1522 = vld [vmem:[%s6] sm:$0x1]
        %v1524 = vlaneseq
        %v1525 = vshrl.u32 %v1524, 7
        %v1526 = vsub.s32 0, %v1525
        %v1527 = vrot.slane %v1522, %v1526
        %1529 = vmatprep.subr.mxu0 0.0
        %1530 = vmatpush1.msra.mxu0 %v1506
        %1531 = vmatprep.subr.mxu0 0.0
        %1532 = vmatpush1.msra.mxu0 %v1507
        %1533 = vmatprep.subr.mxu0 0.0
        %1534 = vmatpush1.msra.mxu0 %v1508
        %1535 = vmatprep.subr.mxu0 0.0
        %1536 = vmatpush1.msra.mxu0 %v1509
        %1537 = vmatprep.subr.mxu0 0.0
        %1538 = vmatpush1.msra.mxu0 %v1510
        %1539 = vmatprep.subr.mxu0 0.0
        %1540 = vmatpush1.msra.mxu0 %v1511
        %1541 = vmatprep.subr.mxu0 0.0
        %1542 = vmatpush1.msra.mxu0 %v1512
        %1543 = vmatprep.subr.mxu0 0.0
        %1544 = vmatpush1.msra.mxu0 %v1513
        %1545 = vmatprep.subr.mxu0 0.0
        %1546 = vmatpush1.msra.mxu0 %v1514
        %1547 = vmatprep.subr.mxu0 0.0
        %1548 = vmatpush1.msra.mxu0 %v1515
        %1549 = vmatprep.subr.mxu0 0.0
        %1550 = vmatpush1.msra.mxu0 %v1516
        %1551 = vmatprep.subr.mxu0 0.0
        %1552 = vmatpush1.msra.mxu0 %v1517
        %1553 = vmatprep.subr.mxu0 0.0
        %1554 = vmatpush1.msra.mxu0 %v1518
        %1555 = vmatprep.subr.mxu0 0.0
        %1556 = vmatpush1.msra.mxu0 %v1519
        %1557 = vmatprep.subr.mxu0 0.0
        %1558 = vmatpush1.msra.mxu0 %v1520
        %1559 = vmatprep.subr.mxu0 0.0
        %1560 = vmatpush1.msra.mxu0 %v1521
        %1561 = vmatprep.subr.mxu0 0.0
        %1562 = vmatpush1.msra.mxu0 0.0
        %1563 = vmatprep.subr.mxu0 0.0
        %1564 = vmatpush1.msra.mxu0 0.0
        %1565 = vmatprep.subr.mxu0 0.0
        %1566 = vmatpush1.msra.mxu0 0.0
        %1567 = vmatprep.subr.mxu0 0.0
        %1568 = vmatpush1.msra.mxu0 0.0
        %1569 = vmatprep.subr.mxu0 0.0
        %1570 = vmatpush1.msra.mxu0 0.0
        %1571 = vmatprep.subr.mxu0 0.0
        %1572 = vmatpush1.msra.mxu0 0.0
        %1573 = vmatprep.subr.mxu0 0.0
        %1574 = vmatpush1.msra.mxu0 0.0
        %1575 = vmatprep.subr.mxu0 0.0
        %1576 = vmatpush1.msra.mxu0 0.0
        %1577 = vmatprep.subr.mxu0 0.0
        %1578 = vmatpush1.msra.mxu0 0.0
        %1579 = vmatprep.subr.mxu0 0.0
        %1580 = vmatpush1.msra.mxu0 0.0
        %1581 = vmatprep.subr.mxu0 0.0
        %1582 = vmatpush1.msra.mxu0 0.0
        %1583 = vmatprep.subr.mxu0 0.0
        %1584 = vmatpush1.msra.mxu0 0.0
        %1585 = vmatprep.subr.mxu0 0.0
        %1586 = vmatpush1.msra.mxu0 0.0
        %1587 = vmatprep.subr.mxu0 0.0
        %1588 = vmatpush1.msra.mxu0 0.0
        %1589 = vmatprep.subr.mxu0 0.0
        %1590 = vmatpush1.msra.mxu0 0.0
        %1591 = vmatprep.subr.mxu0 0.0
        %1592 = vmatpush1.msra.mxu0 0.0
        %1593 = vmatprep.mubr.f32.mxu0 0.0
        %1594 = vmatmul.mubr.f32.gmra.mrb[0].mxu0 %v1505
        %v1595 = vpop.f32.mrb[0].mxu0
        %v1596 = vadd.f32 %v1527, %v1595
        %v1597 = vpop.f32.mrb[0].mxu0
        %1598 = vdwg.mxu0
        %v1599 = vmul.f32 %v1596, 4.0
        %v1600 = vld [vmem:[%s402] sm:$0xff]
        %v1601 = vadd.f32 %v1599, %v1600
        %1602 = vst [vmem:[%s398] sm:$0xff] %v1601
        %s1603 = sand.u32 %s229, 1
        %s1604 = scalar_lea.sflag [#allocation5], %s1603
        %s1605 = sand.u32 %s229, 1
        %s1606 = smul.addr %s1605, 8
        %s1607 = scalar_lea.vmem [#allocation11], %s1606
        // Predicated region
        $region69: #{tpu_custom_call.1} parent=51 // pred_check
          %p1608 = pneg %p239
        $region70: #{tpu_custom_call.1} parent=51 // pred_check_branch
          %1610 = sbr.rel (%p1608) target = $region72
        $region71: #{tpu_custom_call.1} parent=51 // pred_region
          %s1611 = smul.u32 2, %s32
          %s1612 = ssub.s32 1, %s1611
          %s1613 = smul.u32 64, %s1612
          %s1615 = ssub.s32 128, %s1613
          %1616 = vsyncadd %s1604, %s1615
          %p1617 = scmp.ne.s32.totalorder 0, %s1613
          %s1618 = sadd.s32 %s1611, %s31
          %s1619 = smul.addr %s1618, 64
          %s1620 = scalar_lea.hbm %s8, %s1619
          %s1621 = smul.u32 4, %s1612
          %s1622 = sshll.u32 %s1607, 4
          %s1623 = int_to_ptr.vmem [resolvable:$true] %s1622
          %s1624 = sshll.u32 %s1621, 4
          %1628 = dma.vmem_to_hbm [thread:$0]  (%p1617), %s1623, %s1624, %s1620, %s1604, 64, 64, 4
        $region72: #{tpu_custom_call.1} parent=51 // pred_fallthru
          _
      $region52: #{tpu_custom_call.1} parent=5 // pred_fallthru
        _
      %p1629 = scmp.le.s32.totalorder 2, %s22
      // Predicated region
      $region73: #{tpu_custom_call.1} parent=5 // pred_check
        %p1630 = pneg %p1629
      $region74: #{tpu_custom_call.1} parent=5 // pred_check_branch
        %1632 = sbr.rel (%p1630) target = $region76
      $region75: #{tpu_custom_call.1} parent=5 // pred_region
        %s1633 = ssub.s32 %s22, 2
        // Predicated region
        $region77: #{tpu_custom_call.1} parent=75 // pred_check
          %p1634 = pneg %p245
        $region78: #{tpu_custom_call.1} parent=75 // pred_check_branch
          %1636 = sbr.rel (%p1634) target = $region80
        $region79: #{tpu_custom_call.1} parent=75 // pred_region
          %s1637 = sand.u32 %s230, 1
          %s1638 = scalar_lea.sflag [#allocation5], %s1637
          %s1639 = sand.u32 %s230, 1
          %s1640 = smul.addr %s1639, 8
          %s1641 = scalar_lea.vmem [#allocation11], %s1640
          %1642 = dma.done %s1638, 128
        $region80: #{tpu_custom_call.1} parent=75 // pred_fallthru
          _
      $region76: #{tpu_custom_call.1} parent=5 // pred_fallthru
        _
    $region6: #{tpu_custom_call.1} parent=1 // loop_footer
      %s26 = sadd.s32 1, %s22
    $region7: #{tpu_custom_call.1} parent=1 // loop_footer_branch
      %21 = sbr.rel target = $region3
    $region8: #{tpu_custom_call.1} parent=1 // loop_exit
      _
    %1643 = vsyncpa [#allocation4], 1
    %s1644 = scalar_lea.sflag [#allocation4], 1
    %1645 = vsyncpa %s1644, 1
    %1646 = vsyncpa [#allocation7], 1
    %1647 = vsyncpa [#allocation10], 1
    %1648 = vsyncpa [#allocation5], 1
    %s1649 = scalar_lea.sflag [#allocation5], 1
    %1650 = vsyncpa %s1649, 1

</llo_original>
